<compile_context>
chip_gen: v6e
topology: v6e:2x2x1
jax: 0.10.0
libtpu: 0.0.40
codegen_flags: <defaults>
</compile_context>

<pallas_src>
import functools

import numpy as np
import jax
import jax.numpy as jnp
from jax import lax
from jax.experimental import pallas as pl
from jax.experimental.pallas import tpu as pltpu

# nacs(mask_size=320, acc='x8') -> acs_mask_dict['320x8'] = [154, 166]
MASK_SIZE = 320
ACS_LO, ACS_HI = 154, 166
NA = ACS_HI - ACS_LO          # 12 ACS k-space columns


@functools.cache
def _constants(w, lo, hi):
    """Host-side constant matrices (become jit compile-time constants).

    D  (2W, W):    0/1 pair-sum matrix; interleaved (r^2, i^2) lanes -> per-pixel |.|^2.
    KC (2W, 2*Na): interleaved-complex form of the centered orthonormal DFT columns
                   [lo, hi) along W, packed [real | imag] so a single matmul per LHS
                   plane yields both parts of the ACS k-space transform.
    """
    eye = np.eye(w, dtype=np.complex128)
    a = np.fft.fftshift(
        np.fft.fft(np.fft.ifftshift(eye, axes=0), axis=0, norm="ortho"), axes=0)
    awc = a.T[:, lo:hi]                                   # (W, Na) complex = A_W^T[:, lo:hi]
    na = hi - lo

    kr = np.zeros((2 * w, na), dtype=np.float64)          # x_interleaved @ kr == Re(x @ Awc)
    ki = np.zeros((2 * w, na), dtype=np.float64)          # x_interleaved @ ki == Im(x @ Awc)
    kr[0::2, :] = awc.real
    kr[1::2, :] = -awc.imag
    ki[0::2, :] = awc.imag
    ki[1::2, :] = awc.real
    kc = np.concatenate([kr, ki], axis=1).astype(np.float32)   # (2W, 2*Na)

    d = np.zeros((2 * w, w), dtype=np.float32)
    idx = np.arange(w)
    d[2 * idx, idx] = 1.0
    d[2 * idx + 1, idx] = 1.0
    return d, kc


def _loss_kernel(pred_ref, lab_ref, o1i_ref, d_ref, kc_ref, out_ref):
    f32 = jnp.float32

    pred = pred_ref[0]                    # (H, W)   magnitude prediction, this image
    lab = lab_ref[0]                      # (H, 2W)  label, complex-interleaved lanes
    o1i = o1i_ref[...]                    # (H, 2W)  out[1] as complex-interleaved (imag = 0)

    # ---- term 1 pieces: ||pred - |label|||^2 and |||label|||^2 ----------------------
    s = lab * lab                         # r^2, i^2 interleaved
    den1 = jnp.sum(s)                     # == sum(|label|^2) (also the term-2 full energy)
    # Pair-sum matmul = in-kernel deinterleave (0/1 matrix, exact; Mosaic contracts f32
    # operands at fp32 precision — set precision=HIGHEST here if tighter bounds needed).
    mag2 = jnp.dot(s, d_ref[...], preferred_element_type=f32)        # (H, W)
    d1 = pred - jnp.sqrt(mag2)
    num1 = jnp.sum(d1 * d1)

    # ---- term 2 pieces (Parseval): full energies + explicit ACS columns -------------
    diff = o1i - lab                      # complex diff, interleaved (imag part = -li)
    num2_full = jnp.sum(diff * diff)      # ||out[1] - label||^2 (complex Frobenius)

    yd = jnp.dot(diff, kc_ref[...], preferred_element_type=f32)      # (H, 2*Na)
    yl = jnp.dot(lab, kc_ref[...], preferred_element_type=f32)
    acs_num = jnp.sum(yd * yd)            # ACS k-space energy of the diff
    acs_den = jnp.sum(yl * yl)            # ACS k-space energy of the label

    # ---- per-block partial sums, one per sublane row of an (8, 128) tile ------------
    row = lax.broadcasted_iota(jnp.int32, (8, 128), 0)
    tile = (jnp.where(row == 0, num1, 0.0)
            + jnp.where(row == 1, den1, 0.0)
            + jnp.where(row == 2, num2_full, 0.0)
            + jnp.where(row == 3, acs_num, 0.0)
            + jnp.where(row == 4, acs_den, 0.0))
    out_ref[0] = tile.astype(f32)


@jax.jit
def fastmri_loss(pred, label):
    """pred: (B, H, W) float32 magnitude images; label: (B, H, W, 2) float32 fastMRI."""
    B, H, W = pred.shape
    assert label.shape == (B, H, W, 2)
    assert W == MASK_SIZE and B >= 2      # out[1] requires B >= 2 (torch code quirk)

    lab = label.reshape(B, H, 2 * W)      # free contiguous reshape: interleaved lanes
    # out[1] lifted to complex (zero imag), interleaved; tiny (H, 2W) side input.
    o1i = jnp.stack([pred[1], jnp.zeros_like(pred[1])], axis=-1).reshape(H, 2 * W)

    d_np, kc_np = _constants(W, ACS_LO, ACS_HI)
    d = jnp.asarray(d_np)
    kc = jnp.asarray(kc_np)

    partial = pl.pallas_call(
        _loss_kernel,
        out_shape=jax.ShapeDtypeStruct((B, 8, 128), jnp.float32),
        grid=(B,),
        in_specs=[
            pl.BlockSpec((1, H, W), lambda b: (b, 0, 0)),        # pred: one image / step
            pl.BlockSpec((1, H, 2 * W), lambda b: (b, 0, 0)),    # label (interleaved)
            pl.BlockSpec((H, 2 * W), lambda b: (0, 0)),          # o1i: fetched once, reused
            pl.BlockSpec((2 * W, W), lambda b: (0, 0)),          # D:   fetched once, reused
            pl.BlockSpec((2 * W, 2 * NA), lambda b: (0, 0)),     # KC:  fetched once, reused
        ],
        out_specs=pl.BlockSpec((1, 8, 128), lambda b: (b, 0, 0)),
        compiler_params=pltpu.CompilerParams(
            dimension_semantics=("parallel",)),
    )(pred, lab, o1i, d, kc)

    # ---- tiny epilogue on the (B, 5) per-image partial sums -------------------------
    p = partial[:, :5, 0]
    num1, den1, num2_full, acs_num, acs_den = [jnp.sum(p[:, i]) for i in range(5)]
    term1 = jnp.sqrt(num1 / den1)
    # Parseval: non-ACS energy = total - ACS (guard tiny negatives from rounding).
    num2 = jnp.maximum(num2_full - acs_num, 0.0)
    den2 = jnp.maximum(den1 - acs_den, 0.0)
    term2 = 0.1 * jnp.sqrt(num2 / den2)
    return term1 + term2


def reference_loss(pred, label):
    """Pure-JAX reference of the same semantics (full FFT + mask), for a sanity check."""
    lr = label[..., 0]
    li = label[..., 1]
    mag = jnp.sqrt(lr * lr + li * li)
    term1 = jnp.linalg.norm(pred - mag) / jnp.linalg.norm(mag)

    def fft2c(x):
        x = jnp.fft.ifftshift(x, axes=(-2, -1))
        x = jnp.fft.fft2(x, axes=(-2, -1), norm="ortho")
        return jnp.fft.fftshift(x, axes=(-2, -1))

    W = pred.shape[-1]
    w_idx = jnp.arange(W)
    keep = jnp.where((w_idx >= ACS_LO) & (w_idx < ACS_HI), 0.0, 1.0)

    ko = fft2c(pred[1].astype(jnp.complex64)) * keep
    kl = fft2c((lr + 1j * li).astype(jnp.complex64)) * keep
    diff = ko[None] - kl
    term2 = 0.1 * jnp.sqrt(jnp.sum(jnp.abs(diff) ** 2)) / jnp.sqrt(
        jnp.sum(jnp.abs(kl) ** 2))
    return term1 + term2


if __name__ == "__main__":
    key = jax.random.PRNGKey(0)
    B, H, W = 2, 16, MASK_SIZE
    k1, k2 = jax.random.split(key)
    pred = jax.random.normal(k1, (B, H, W), dtype=jnp.float32)
    label = jax.random.normal(k2, (B, H, W, 2), dtype=jnp.float32)

    loss = fastmri_loss(pred, label)
    jax.block_until_ready(loss)

    ref = reference_loss(pred, label)
    jax.block_until_ready(ref)

    lv, rv = float(loss), float(ref)
    assert np.isfinite(lv), "kernel produced non-finite loss"
    assert abs(lv - rv) / (abs(rv) + 1e-8) < 1e-2, (lv, rv)
    print("KERNEL_OK")
</pallas_src>

<mosaic_0001>
module attributes {stable_mosaic.version = 11 : i64} {
  func.func @_loss_kernel(%arg0: i32, %arg1: memref<1x16x320xf32, #tpu.memory_space<vmem>>, %arg2: memref<1x16x640xf32, #tpu.memory_space<vmem>>, %arg3: memref<16x640xf32, #tpu.memory_space<vmem>>, %arg4: memref<640x320xf32, #tpu.memory_space<vmem>>, %arg5: memref<640x24xf32, #tpu.memory_space<vmem>>, %arg6: memref<1x8x128xf32, #tpu.memory_space<vmem>>) attributes {dimension_semantics = [#tpu.dimension_semantics<parallel>], iteration_bounds = array<i64: 2>, scalar_prefetch = 0 : i64, scratch_operands = 0 : i64, tpu.core_type = #tpu.core_type<tc>, window_params = [{transform_indices = @transform_0, window_bounds = array<i64: 1, 16, 320>}, {transform_indices = @transform_1, window_bounds = array<i64: 1, 16, 640>}, {pipeline_mode = #tpu.pipeline_mode<synchronous>, transform_indices = @transform_2, window_bounds = array<i64: 16, 640>}, {pipeline_mode = #tpu.pipeline_mode<synchronous>, transform_indices = @transform_3, window_bounds = array<i64: 640, 320>}, {pipeline_mode = #tpu.pipeline_mode<synchronous>, transform_indices = @transform_4, window_bounds = array<i64: 640, 24>}, {transform_indices = @transform_5, window_bounds = array<i64: 1, 8, 128>}]} {
    %c0 = arith.constant 0 : index
    %c0_0 = arith.constant 0 : index
    %c0_1 = arith.constant 0 : index
    %0 = vector.load %arg1[%c0, %c0_0, %c0_1] : memref<1x16x320xf32, #tpu.memory_space<vmem>>, vector<1x16x320xf32>
    %1 = vector.shape_cast %0 : vector<1x16x320xf32> to vector<16x320xf32>
    %c0_2 = arith.constant 0 : index
    %c0_3 = arith.constant 0 : index
    %c0_4 = arith.constant 0 : index
    %2 = vector.load %arg2[%c0_2, %c0_3, %c0_4] : memref<1x16x640xf32, #tpu.memory_space<vmem>>, vector<1x16x640xf32>
    %3 = vector.shape_cast %2 : vector<1x16x640xf32> to vector<16x640xf32>
    %c0_5 = arith.constant 0 : index
    %c0_6 = arith.constant 0 : index
    %4 = vector.load %arg3[%c0_5, %c0_6] : memref<16x640xf32, #tpu.memory_space<vmem>>, vector<16x640xf32>
    %5 = arith.mulf %3, %3 : vector<16x640xf32>
    %6 = vector.shape_cast %5 : vector<16x640xf32> to vector<1x16x640xf32>
    %cst = arith.constant dense<0.000000e+00> : vector<1xf32>
    %7 = vector.multi_reduction <add>, %6, %cst [1, 2] : vector<1x16x640xf32> to vector<1xf32>
    %8 = vector.shape_cast %7 : vector<1xf32> to vector<1x1x1xf32>
    %9 = vector.extract %8[0, 0, 0] : f32 from vector<1x1x1xf32>
    %c0_7 = arith.constant 0 : index
    %c0_8 = arith.constant 0 : index
    %10 = vector.load %arg4[%c0_7, %c0_8] : memref<640x320xf32, #tpu.memory_space<vmem>>, vector<640x320xf32>
    %cst_9 = arith.constant dense<0.000000e+00> : vector<16x320xf32>
    %11 = tpu.matmul %5, %10, %cst_9 {dimension_numbers = #tpu.dot_dimension_numbers<[1], [0], [0], [1], [0, 0, 1, 1], [], []>} : vector<16x640xf32>, vector<640x320xf32>, vector<16x320xf32> -> vector<16x320xf32>
    %12 = math.sqrt %11 : vector<16x320xf32>
    %13 = arith.subf %1, %12 : vector<16x320xf32>
    %14 = arith.mulf %13, %13 : vector<16x320xf32>
    %15 = vector.shape_cast %14 : vector<16x320xf32> to vector<1x16x320xf32>
    %cst_10 = arith.constant dense<0.000000e+00> : vector<1xf32>
    %16 = vector.multi_reduction <add>, %15, %cst_10 [1, 2] : vector<1x16x320xf32> to vector<1xf32>
    %17 = vector.shape_cast %16 : vector<1xf32> to vector<1x1x1xf32>
    %18 = vector.extract %17[0, 0, 0] : f32 from vector<1x1x1xf32>
    %19 = arith.subf %4, %3 : vector<16x640xf32>
    %20 = arith.mulf %19, %19 : vector<16x640xf32>
    %21 = vector.shape_cast %20 : vector<16x640xf32> to vector<1x16x640xf32>
    %cst_11 = arith.constant dense<0.000000e+00> : vector<1xf32>
    %22 = vector.multi_reduction <add>, %21, %cst_11 [1, 2] : vector<1x16x640xf32> to vector<1xf32>
    %23 = vector.shape_cast %22 : vector<1xf32> to vector<1x1x1xf32>
    %24 = vector.extract %23[0, 0, 0] : f32 from vector<1x1x1xf32>
    %c0_12 = arith.constant 0 : index
    %c0_13 = arith.constant 0 : index
    %25 = vector.load %arg5[%c0_12, %c0_13] : memref<640x24xf32, #tpu.memory_space<vmem>>, vector<640x24xf32>
    %cst_14 = arith.constant dense<0.000000e+00> : vector<16x24xf32>
    %26 = tpu.matmul %19, %25, %cst_14 {dimension_numbers = #tpu.dot_dimension_numbers<[1], [0], [0], [1], [0, 0, 1, 1], [], []>} : vector<16x640xf32>, vector<640x24xf32>, vector<16x24xf32> -> vector<16x24xf32>
    %c0_15 = arith.constant 0 : index
    %c0_16 = arith.constant 0 : index
    %27 = vector.load %arg5[%c0_15, %c0_16] : memref<640x24xf32, #tpu.memory_space<vmem>>, vector<640x24xf32>
    %cst_17 = arith.constant dense<0.000000e+00> : vector<16x24xf32>
    %28 = tpu.matmul %3, %27, %cst_17 {dimension_numbers = #tpu.dot_dimension_numbers<[1], [0], [0], [1], [0, 0, 1, 1], [], []>} : vector<16x640xf32>, vector<640x24xf32>, vector<16x24xf32> -> vector<16x24xf32>
    %29 = arith.mulf %26, %26 : vector<16x24xf32>
    %30 = vector.shape_cast %29 : vector<16x24xf32> to vector<1x16x24xf32>
    %cst_18 = arith.constant dense<0.000000e+00> : vector<1xf32>
    %31 = vector.multi_reduction <add>, %30, %cst_18 [1, 2] : vector<1x16x24xf32> to vector<1xf32>
    %32 = vector.shape_cast %31 : vector<1xf32> to vector<1x1x1xf32>
    %33 = vector.extract %32[0, 0, 0] : f32 from vector<1x1x1xf32>
    %34 = arith.mulf %28, %28 : vector<16x24xf32>
    %35 = vector.shape_cast %34 : vector<16x24xf32> to vector<1x16x24xf32>
    %cst_19 = arith.constant dense<0.000000e+00> : vector<1xf32>
    %36 = vector.multi_reduction <add>, %35, %cst_19 [1, 2] : vector<1x16x24xf32> to vector<1xf32>
    %37 = vector.shape_cast %36 : vector<1xf32> to vector<1x1x1xf32>
    %38 = vector.extract %37[0, 0, 0] : f32 from vector<1x1x1xf32>
    %39 = tpu.iota {dimensions = array<i32: 0>} : vector<8x128xi32>
    %c0_i32 = arith.constant 0 : i32
    %40 = vector.broadcast %c0_i32 : i32 to vector<8x128xi32>
    %41 = arith.cmpi eq, %39, %40 : vector<8x128xi32>
    %cst_20 = arith.constant 0.000000e+00 : f32
    %42 = vector.broadcast %18 : f32 to vector<8x128xf32>
    %43 = vector.broadcast %cst_20 : f32 to vector<8x128xf32>
    %44 = arith.select %41, %42, %43 : vector<8x128xi1>, vector<8x128xf32>
    %c1_i32 = arith.constant 1 : i32
    %45 = vector.broadcast %c1_i32 : i32 to vector<8x128xi32>
    %46 = arith.cmpi eq, %39, %45 : vector<8x128xi32>
    %cst_21 = arith.constant 0.000000e+00 : f32
    %47 = vector.broadcast %9 : f32 to vector<8x128xf32>
    %48 = vector.broadcast %cst_21 : f32 to vector<8x128xf32>
    %49 = arith.select %46, %47, %48 : vector<8x128xi1>, vector<8x128xf32>
    %50 = arith.addf %44, %49 : vector<8x128xf32>
    %c2_i32 = arith.constant 2 : i32
    %51 = vector.broadcast %c2_i32 : i32 to vector<8x128xi32>
    %52 = arith.cmpi eq, %39, %51 : vector<8x128xi32>
    %cst_22 = arith.constant 0.000000e+00 : f32
    %53 = vector.broadcast %24 : f32 to vector<8x128xf32>
    %54 = vector.broadcast %cst_22 : f32 to vector<8x128xf32>
    %55 = arith.select %52, %53, %54 : vector<8x128xi1>, vector<8x128xf32>
    %56 = arith.addf %50, %55 : vector<8x128xf32>
    %c3_i32 = arith.constant 3 : i32
    %57 = vector.broadcast %c3_i32 : i32 to vector<8x128xi32>
    %58 = arith.cmpi eq, %39, %57 : vector<8x128xi32>
    %cst_23 = arith.constant 0.000000e+00 : f32
    %59 = vector.broadcast %33 : f32 to vector<8x128xf32>
    %60 = vector.broadcast %cst_23 : f32 to vector<8x128xf32>
    %61 = arith.select %58, %59, %60 : vector<8x128xi1>, vector<8x128xf32>
    %62 = arith.addf %56, %61 : vector<8x128xf32>
    %c4_i32 = arith.constant 4 : i32
    %63 = vector.broadcast %c4_i32 : i32 to vector<8x128xi32>
    %64 = arith.cmpi eq, %39, %63 : vector<8x128xi32>
    %cst_24 = arith.constant 0.000000e+00 : f32
    %65 = vector.broadcast %38 : f32 to vector<8x128xf32>
    %66 = vector.broadcast %cst_24 : f32 to vector<8x128xf32>
    %67 = arith.select %64, %65, %66 : vector<8x128xi1>, vector<8x128xf32>
    %68 = arith.addf %62, %67 : vector<8x128xf32>
    %c0_25 = arith.constant 0 : index
    %c0_26 = arith.constant 0 : index
    %c0_27 = arith.constant 0 : index
    %69 = vector.load %arg6[%c0_25, %c0_26, %c0_27] : memref<1x8x128xf32, #tpu.memory_space<vmem>>, vector<1x8x128xf32>
    %70 = vector.shape_cast %69 : vector<1x8x128xf32> to vector<8x128xf32>
    %71 = vector.shape_cast %68 : vector<8x128xf32> to vector<1x8x128xf32>
    tpu.vector_store %arg6[%c0_25, %c0_26, %c0_27], %71 {strides = array<i32>} : memref<1x8x128xf32, #tpu.memory_space<vmem>>, vector<1x8x128xf32>,
    return
  }
  func.func @transform_0(%arg0: i32) -> (i32, i32, i32) {
    %c0_i32 = arith.constant 0 : i32
    %c0_i32_0 = arith.constant 0 : i32
    %c0_i32_1 = arith.constant 0 : i32
    return %arg0, %c0_i32, %c0_i32_0 : i32, i32, i32
  }
  func.func @transform_1(%arg0: i32) -> (i32, i32, i32) {
    %c0_i32 = arith.constant 0 : i32
    %c0_i32_0 = arith.constant 0 : i32
    %c0_i32_1 = arith.constant 0 : i32
    return %arg0, %c0_i32, %c0_i32_0 : i32, i32, i32
  }
  func.func @transform_2(%arg0: i32) -> (i32, i32) {
    %c0_i32 = arith.constant 0 : i32
    %c0_i32_0 = arith.constant 0 : i32
    %c0_i32_1 = arith.constant 0 : i32
    return %c0_i32, %c0_i32_0 : i32, i32
  }
  func.func @transform_3(%arg0: i32) -> (i32, i32) {
    %c0_i32 = arith.constant 0 : i32
    %c0_i32_0 = arith.constant 0 : i32
    %c0_i32_1 = arith.constant 0 : i32
    return %c0_i32, %c0_i32_0 : i32, i32
  }
  func.func @transform_4(%arg0: i32) -> (i32, i32) {
    %c0_i32 = arith.constant 0 : i32
    %c0_i32_0 = arith.constant 0 : i32
    %c0_i32_1 = arith.constant 0 : i32
    return %c0_i32, %c0_i32_0 : i32, i32
  }
  func.func @transform_5(%arg0: i32) -> (i32, i32, i32) {
    %c0_i32 = arith.constant 0 : i32
    %c0_i32_0 = arith.constant 0 : i32
    %c0_i32_1 = arith.constant 0 : i32
    return %arg0, %c0_i32, %c0_i32_0 : i32, i32, i32
  }
}

</mosaic_0001>

<llo_original>
// kernel: fastmri_loss.1
$region0: #{fastmri_loss.1}
  #allocation0 [shape = 'u32[]', space=smem, size = 0x4, offset = 0x4, fixed_abs, tag = 'smem constant byte address 0x4 - core index']
  #allocation1 [shape = 'u32[144,128]{1,0:T(1,128)}', space=vmem, size = 0x12000, scoped, tag = 'internal scratch']
  %s0 = inlined_call_operand.vmem [shape: f32[2,16,320], index: 0, kind: input, shape index: {}]
  %s1 = inlined_call_operand.vmem [shape: f32[2,16,640], index: 1, kind: input, shape index: {}]
  %s2 = inlined_call_operand.vmem [shape: f32[16,640], index: 2, kind: input, shape index: {}]
  %s3 = inlined_call_operand.vmem [shape: f32[640,320], index: 3, kind: input, shape index: {}]
  %s4 = inlined_call_operand.vmem [shape: f32[640,24], index: 4, kind: input, shape index: {}]
  %s5 = inlined_call_operand.vmem [shape: f32[2,8,128], index: 5, kind: output, shape index: {}]
  %s6 = sld [smem:[#allocation0]]
  $region53: #{fastmri_loss.1} parent=0
    _
  %s8 = ssub.s32 1, %s6
  %s9 = scalar_select 0, %s8, %s6
  loop: start=0, step=1, limit=4
  $region2: #{fastmri_loss.1} parent=0 // loop_pre_header
    _
  $region3: #{fastmri_loss.1} parent=0 // loop_header
    %s11 = sphi 0, %s15
    %p12 = scmp.ge.s32.totalorder %s11, 4
    %s21 = sphi 0, %s23
    %s24 = sphi 0, %s21
    %s25 = sphi 0, %s24
    %s41 = sphi 0, %s25
    %s47 = sphi 0, %s49
    %s50 = sphi 0, %s47
    %s51 = sphi 0, %s50
    %s67 = sphi 0, %s51
    %s71 = sphi 0, %s71
    %s73 = sphi 0, %s71
    %s74 = sphi 0, %s73
    %s88 = sphi 0, %s74
    %s92 = sphi 0, %s92
    %s94 = sphi 0, %s92
    %s95 = sphi 0, %s94
    %s109 = sphi 0, %s95
    %s113 = sphi 0, %s113
    %s115 = sphi 0, %s113
    %s116 = sphi 0, %s115
    %s130 = sphi 0, %s116
    %s136 = sphi 0, %s138
    %s139 = sphi 0, %s136
    %s140 = sphi 0, %s139
    %s156 = sphi 0, %s140
  $region4: #{fastmri_loss.1} parent=0 // loop_header_branch
    %14 = sbr.rel (%p12) target = $region8
  $region5: #{fastmri_loss.1} parent=0 // loop_body
    %s16 = ssub.s32 %s11, 1
    %s17 = ssub.s32 %s11, 2
    %s18 = sadd.s32 %s11, 1
    %s19 = ssub.s32 %s11, %s18
    %p20 = scmp.eq.s32.totalorder %s19, 0
    %s22 = sadd.s32 %s21, 1
    %s23 = scalar_select %p20, %s21, %s22
    %p26 = pneg %p20
    %p27 = scmp.eq.s32.totalorder %s11, 1
    %p28 = por %p26, %p27
    %p29 = scmp.ne.s32.totalorder %s21, %s24
    %p30 = scmp.eq.s32.totalorder %s11, 0
    %p31 = por %p29, %p30
    %p32 = scmp.ne.s32.totalorder %s21, %s24
    %p33 = scmp.eq.s32.totalorder %s16, 1
    %p34 = por %p32, %p33
    %p35 = scmp.ne.s32.totalorder %s24, %s25
    %p36 = scmp.eq.s32.totalorder %s16, 0
    %p37 = por %p35, %p36
    %p38 = scmp.ne.s32.totalorder %s24, %s25
    %p39 = scmp.eq.s32.totalorder %s17, 1
    %p40 = por %p38, %p39
    %p42 = scmp.ne.s32.totalorder %s25, %s41
    %p43 = scmp.eq.s32.totalorder %s17, 0
    %p44 = por %p42, %p43
    %s45 = ssub.s32 %s11, %s18
    %p46 = scmp.eq.s32.totalorder %s45, 0
    %s48 = sadd.s32 %s47, 1
    %s49 = scalar_select %p46, %s47, %s48
    %p52 = pneg %p46
    %p53 = scmp.eq.s32.totalorder %s11, 1
    %p54 = por %p52, %p53
    %p55 = scmp.ne.s32.totalorder %s47, %s50
    %p56 = scmp.eq.s32.totalorder %s11, 0
    %p57 = por %p55, %p56
    %p58 = scmp.ne.s32.totalorder %s47, %s50
    %p59 = scmp.eq.s32.totalorder %s16, 1
    %p60 = por %p58, %p59
    %p61 = scmp.ne.s32.totalorder %s50, %s51
    %p62 = scmp.eq.s32.totalorder %s16, 0
    %p63 = por %p61, %p62
    %p64 = scmp.ne.s32.totalorder %s50, %s51
    %p65 = scmp.eq.s32.totalorder %s17, 1
    %p66 = por %p64, %p65
    %p68 = scmp.ne.s32.totalorder %s51, %s67
    %p69 = scmp.eq.s32.totalorder %s17, 0
    %p70 = por %p68, %p69
    %s72 = sadd.s32 %s71, 1
    %p75 = scmp.eq.s32.totalorder %s11, 1
    %p76 = scmp.ne.s32.totalorder %s71, %s73
    %p77 = scmp.eq.s32.totalorder %s11, 0
    %p78 = por %p76, %p77
    %p79 = scmp.ne.s32.totalorder %s71, %s73
    %p80 = scmp.eq.s32.totalorder %s16, 1
    %p81 = por %p79, %p80
    %p82 = scmp.ne.s32.totalorder %s73, %s74
    %p83 = scmp.eq.s32.totalorder %s16, 0
    %p84 = por %p82, %p83
    %p85 = scmp.ne.s32.totalorder %s73, %s74
    %p86 = scmp.eq.s32.totalorder %s17, 1
    %p87 = por %p85, %p86
    %p89 = scmp.ne.s32.totalorder %s74, %s88
    %p90 = scmp.eq.s32.totalorder %s17, 0
    %p91 = por %p89, %p90
    %s93 = sadd.s32 %s92, 1
    %p96 = scmp.eq.s32.totalorder %s11, 1
    %p97 = scmp.ne.s32.totalorder %s92, %s94
    %p98 = scmp.eq.s32.totalorder %s11, 0
    %p99 = por %p97, %p98
    %p100 = scmp.ne.s32.totalorder %s92, %s94
    %p101 = scmp.eq.s32.totalorder %s16, 1
    %p102 = por %p100, %p101
    %p103 = scmp.ne.s32.totalorder %s94, %s95
    %p104 = scmp.eq.s32.totalorder %s16, 0
    %p105 = por %p103, %p104
    %p106 = scmp.ne.s32.totalorder %s94, %s95
    %p107 = scmp.eq.s32.totalorder %s17, 1
    %p108 = por %p106, %p107
    %p110 = scmp.ne.s32.totalorder %s95, %s109
    %p111 = scmp.eq.s32.totalorder %s17, 0
    %p112 = por %p110, %p111
    %s114 = sadd.s32 %s113, 1
    %p117 = scmp.eq.s32.totalorder %s11, 1
    %p118 = scmp.ne.s32.totalorder %s113, %s115
    %p119 = scmp.eq.s32.totalorder %s11, 0
    %p120 = por %p118, %p119
    %p121 = scmp.ne.s32.totalorder %s113, %s115
    %p122 = scmp.eq.s32.totalorder %s16, 1
    %p123 = por %p121, %p122
    %p124 = scmp.ne.s32.totalorder %s115, %s116
    %p125 = scmp.eq.s32.totalorder %s16, 0
    %p126 = por %p124, %p125
    %p127 = scmp.ne.s32.totalorder %s115, %s116
    %p128 = scmp.eq.s32.totalorder %s17, 1
    %p129 = por %p127, %p128
    %p131 = scmp.ne.s32.totalorder %s116, %s130
    %p132 = scmp.eq.s32.totalorder %s17, 0
    %p133 = por %p131, %p132
    %s134 = ssub.s32 %s11, %s18
    %p135 = scmp.eq.s32.totalorder %s134, 0
    %s137 = sadd.s32 %s136, 1
    %s138 = scalar_select %p135, %s136, %s137
    %p141 = pneg %p135
    %p142 = scmp.eq.s32.totalorder %s11, 1
    %p143 = por %p141, %p142
    %p144 = scmp.ne.s32.totalorder %s136, %s139
    %p145 = scmp.eq.s32.totalorder %s11, 0
    %p146 = por %p144, %p145
    %p147 = scmp.ne.s32.totalorder %s136, %s139
    %p148 = scmp.eq.s32.totalorder %s16, 1
    %p149 = por %p147, %p148
    %p150 = scmp.ne.s32.totalorder %s139, %s140
    %p151 = scmp.eq.s32.totalorder %s16, 0
    %p152 = por %p150, %p151
    %p153 = scmp.ne.s32.totalorder %s139, %s140
    %p154 = scmp.eq.s32.totalorder %s17, 1
    %p155 = por %p153, %p154
    %p157 = scmp.ne.s32.totalorder %s140, %s156
    %p158 = scmp.eq.s32.totalorder %s17, 0
    %p159 = por %p157, %p158
    %p160 = scmp.le.s32.totalorder 1, %s11
    %p161 = scmp.lt.s32.totalorder %s11, 3
    %p162 = pnand %p160, %p161
    %p163 = pneg %p162
    // Predicated region
    $region9: #{fastmri_loss.1} parent=5 // pred_check
      _
    $region10: #{fastmri_loss.1} parent=5 // pred_check_branch
      %165 = sbr.rel (%p162) target = $region12
    $region11: #{fastmri_loss.1} parent=5 // pred_region
      %s166 = ssub.s32 %s11, 1
      // Predicated region
      $region13: #{fastmri_loss.1} parent=11 // pred_check
        %p167 = pneg %p84
      $region14: #{fastmri_loss.1} parent=11 // pred_check_branch
        %169 = sbr.rel (%p167) target = $region16
      $region15: #{fastmri_loss.1} parent=11 // pred_region
        _
      $region16: #{fastmri_loss.1} parent=11 // pred_fallthru
        _
      // Predicated region
      $region17: #{fastmri_loss.1} parent=11 // pred_check
        %p170 = pneg %p105
      $region18: #{fastmri_loss.1} parent=11 // pred_check_branch
        %172 = sbr.rel (%p170) target = $region20
      $region19: #{fastmri_loss.1} parent=11 // pred_region
        _
      $region20: #{fastmri_loss.1} parent=11 // pred_fallthru
        _
      // Predicated region
      $region21: #{fastmri_loss.1} parent=11 // pred_check
        %p173 = pneg %p126
      $region22: #{fastmri_loss.1} parent=11 // pred_check_branch
        %175 = sbr.rel (%p173) target = $region24
      $region23: #{fastmri_loss.1} parent=11 // pred_region
        _
      $region24: #{fastmri_loss.1} parent=11 // pred_fallthru
        _
    $region12: #{fastmri_loss.1} parent=5 // pred_fallthru
      _
    %p176 = scmp.lt.s32.totalorder %s11, 2
    // Predicated region
    $region25: #{fastmri_loss.1} parent=5 // pred_check
      %p177 = pneg %p176
    $region26: #{fastmri_loss.1} parent=5 // pred_check_branch
      %179 = sbr.rel (%p177) target = $region28
    $region27: #{fastmri_loss.1} parent=5 // pred_region
      // Predicated region
      $region29: #{fastmri_loss.1} parent=27 // pred_check
        %p180 = pneg %p31
      $region30: #{fastmri_loss.1} parent=27 // pred_check_branch
        %182 = sbr.rel (%p180) target = $region32
      $region31: #{fastmri_loss.1} parent=27 // pred_region
        %p183 = scmp.lt.s32.totalorder %s11, 1
        %s184 = scalar_select %p183, %s11, 1
        %s185 = smul.addr %s184, 6
        %s186 = smul.addr %s185, 8
        %s187 = scalar_lea.vmem %s0, %s186
      $region32: #{fastmri_loss.1} parent=27 // pred_fallthru
        _
      // Predicated region
      $region33: #{fastmri_loss.1} parent=27 // pred_check
        %p188 = pneg %p57
      $region34: #{fastmri_loss.1} parent=27 // pred_check_branch
        %190 = sbr.rel (%p188) target = $region36
      $region35: #{fastmri_loss.1} parent=27 // pred_region
        %p191 = scmp.lt.s32.totalorder %s11, 1
        %s192 = scalar_select %p191, %s11, 1
        %s193 = smul.addr %s192, 10
        %s194 = smul.addr %s193, 8
        %s195 = scalar_lea.vmem %s1, %s194
      $region36: #{fastmri_loss.1} parent=27 // pred_fallthru
        _
    $region28: #{fastmri_loss.1} parent=5 // pred_fallthru
      _
    %p196 = scmp.le.s32.totalorder 1, %s11
    %p197 = scmp.lt.s32.totalorder %s11, 3
    %p198 = pnand %p196, %p197
    %p199 = pneg %p198
    // Predicated region
    $region37: #{fastmri_loss.1} parent=5 // pred_check
      _
    $region38: #{fastmri_loss.1} parent=5 // pred_check_branch
      %201 = sbr.rel (%p198) target = $region40
    $region39: #{fastmri_loss.1} parent=5 // pred_region
      %s202 = ssub.s32 %s11, 1
      %p203 = scmp.lt.s32.totalorder %s16, 1
      %s204 = scalar_select %p203, %s16, 1
      %s205 = smul.addr %s204, 6
      %s206 = smul.addr %s205, 8
      %s207 = scalar_lea.vmem %s0, %s206
      %p208 = pneg %p37
      %p209 = pneg %p34
      %p210 = scmp.lt.s32.totalorder %s16, 1
      %s211 = scalar_select %p210, %s16, 1
      %s212 = smul.addr %s211, 10
      %s213 = smul.addr %s212, 8
      %s214 = scalar_lea.vmem %s1, %s213
      %p215 = pneg %p63
      %p216 = pneg %p60
      %p217 = pneg %p84
      %p218 = pneg %p81
      %p219 = pneg %p105
      %p220 = pneg %p102
      %p221 = pneg %p126
      %p222 = pneg %p123
      %p223 = pneg %p152
      %p224 = pneg %p149
      %p225 = scmp.lt.s32.totalorder %s16, 1
      %s226 = scalar_select %p225, %s16, 1
      %s227 = smul.addr %s226, 8
      %s228 = scalar_lea.vmem %s5, %s227
      %p229 = scmp.lt.s32.totalorder %s16, 1
      %s230 = scalar_select %p229, %s16, 1
      %s231 = smul.addr %s230, 6
      %s232 = smul.addr %s231, 8
      %s233 = scalar_lea.vmem %s0, %s232
      %p234 = scmp.lt.s32.totalorder %s16, 1
      %s235 = scalar_select %p234, %s16, 1
      %s236 = smul.addr %s235, 10
      %s237 = smul.addr %s236, 8
      %s238 = scalar_lea.vmem %s1, %s237
      %p239 = scmp.lt.s32.totalorder %s16, 1
      %s240 = scalar_select %p239, %s16, 1
      %s241 = smul.addr %s240, 8
      %s242 = scalar_lea.vmem %s5, %s241
      %v243 = vld [vmem:[%s233] sm:$0xff]
      %v244 = vld [vmem:[%s233 + $0x8] sm:$0xff]
      %v245 = vld [vmem:[%s233 + $0x10] sm:$0xff]
      %v246 = vld [vmem:[%s233 + $0x18] sm:$0xff]
      %v247 = vld [vmem:[%s233 + $0x20] sm:$0xff]
      %v248 = vld [vmem:[%s233 + $0x28] sm:$0xff]
      %v249 = vld [vmem:[%s238] sm:$0xff]
      %v250 = vld [vmem:[%s238 + $0x8] sm:$0xff]
      %v251 = vld [vmem:[%s238 + $0x10] sm:$0xff]
      %v252 = vld [vmem:[%s238 + $0x18] sm:$0xff]
      %v253 = vld [vmem:[%s238 + $0x20] sm:$0xff]
      %v254 = vld [vmem:[%s238 + $0x28] sm:$0xff]
      %v255 = vld [vmem:[%s238 + $0x30] sm:$0xff]
      %v256 = vld [vmem:[%s238 + $0x38] sm:$0xff]
      %v257 = vld [vmem:[%s238 + $0x40] sm:$0xff]
      %v258 = vld [vmem:[%s238 + $0x48] sm:$0xff]
      %v259 = vld [vmem:[%s2] sm:$0xff]
      %v260 = vld [vmem:[%s2 + $0x8] sm:$0xff]
      %v261 = vld [vmem:[%s2 + $0x10] sm:$0xff]
      %v262 = vld [vmem:[%s2 + $0x18] sm:$0xff]
      %v263 = vld [vmem:[%s2 + $0x20] sm:$0xff]
      %v264 = vld [vmem:[%s2 + $0x28] sm:$0xff]
      %v265 = vld [vmem:[%s2 + $0x30] sm:$0xff]
      %v266 = vld [vmem:[%s2 + $0x38] sm:$0xff]
      %v267 = vld [vmem:[%s2 + $0x40] sm:$0xff]
      %v268 = vld [vmem:[%s2 + $0x48] sm:$0xff]
      %v269 = vmul.f32 %v249, %v249
      %v270 = vmul.f32 %v250, %v250
      %v271 = vmul.f32 %v251, %v251
      %v272 = vmul.f32 %v252, %v252
      %v273 = vmul.f32 %v253, %v253
      %v274 = vmul.f32 %v254, %v254
      %v275 = vmul.f32 %v255, %v255
      %v276 = vmul.f32 %v256, %v256
      %v277 = vmul.f32 %v257, %v257
      %v278 = vmul.f32 %v258, %v258
      %v279 = vadd.f32 %v269, %v270
      %v280 = vadd.f32 %v279, %v271
      %v281 = vadd.f32 %v280, %v272
      %v282 = vadd.f32 %v281, %v273
      %v283 = vadd.f32 %v282, %v274
      %v284 = vadd.f32 %v283, %v275
      %v285 = vadd.f32 %v284, %v276
      %v286 = vadd.f32 %v285, %v277
      %v287 = vadd.f32 %v286, %v278
      %288 = vadd.xlane.f32.xlu0 %v287
      %v289 = vpop.xlane.xlu0 %288
      %v290 = vrot.slane %v289, 4
      %v291 = vadd.f32 %v289, %v290
      %v292 = vrot.slane %v291, 2
      %v293 = vadd.f32 %v291, %v292
      %v294 = vrot.slane %v293, 1
      %v295 = vadd.f32 %v293, %v294
      %s296 = vtos %v295
      %v297 = vld [vmem:[%s3] sm:$0xff]
      %v298 = vld [vmem:[%s3 + $0x8] sm:$0xff]
      %v299 = vld [vmem:[%s3 + $0x10] sm:$0xff]
      %v300 = vld [vmem:[%s3 + $0x18] sm:$0xff]
      %v301 = vld [vmem:[%s3 + $0x20] sm:$0xff]
      %v302 = vld [vmem:[%s3 + $0x28] sm:$0xff]
      %v303 = vld [vmem:[%s3 + $0x30] sm:$0xff]
      %v304 = vld [vmem:[%s3 + $0x38] sm:$0xff]
      %v305 = vld [vmem:[%s3 + $0x40] sm:$0xff]
      %v306 = vld [vmem:[%s3 + $0x48] sm:$0xff]
      %v307 = vld [vmem:[%s3 + $0x50] sm:$0xff]
      %v308 = vld [vmem:[%s3 + $0x58] sm:$0xff]
      %v309 = vld [vmem:[%s3 + $0x60] sm:$0xff]
      %v310 = vld [vmem:[%s3 + $0x68] sm:$0xff]
      %v311 = vld [vmem:[%s3 + $0x70] sm:$0xff]
      %v312 = vld [vmem:[%s3 + $0x78] sm:$0xff]
      %v313 = vld [vmem:[%s3 + $0x80] sm:$0xff]
      %v314 = vld [vmem:[%s3 + $0x88] sm:$0xff]
      %v315 = vld [vmem:[%s3 + $0x90] sm:$0xff]
      %v316 = vld [vmem:[%s3 + $0x98] sm:$0xff]
      %v317 = vld [vmem:[%s3 + $0xa0] sm:$0xff]
      %v318 = vld [vmem:[%s3 + $0xa8] sm:$0xff]
      %v319 = vld [vmem:[%s3 + $0xb0] sm:$0xff]
      %v320 = vld [vmem:[%s3 + $0xb8] sm:$0xff]
      %v321 = vld [vmem:[%s3 + $0xc0] sm:$0xff]
      %v322 = vld [vmem:[%s3 + $0xc8] sm:$0xff]
      %v323 = vld [vmem:[%s3 + $0xd0] sm:$0xff]
      %v324 = vld [vmem:[%s3 + $0xd8] sm:$0xff]
      %v325 = vld [vmem:[%s3 + $0xe0] sm:$0xff]
      %v326 = vld [vmem:[%s3 + $0xe8] sm:$0xff]
      %v327 = vld [vmem:[%s3 + $0xf0] sm:$0xff]
      %v328 = vld [vmem:[%s3 + $0xf8] sm:$0xff]
      %v329 = vld [vmem:[%s3 + $0x100] sm:$0xff]
      %v330 = vld [vmem:[%s3 + $0x108] sm:$0xff]
      %v331 = vld [vmem:[%s3 + $0x110] sm:$0xff]
      %v332 = vld [vmem:[%s3 + $0x118] sm:$0xff]
      %v333 = vld [vmem:[%s3 + $0x120] sm:$0xff]
      %v334 = vld [vmem:[%s3 + $0x128] sm:$0xff]
      %v335 = vld [vmem:[%s3 + $0x130] sm:$0xff]
      %v336 = vld [vmem:[%s3 + $0x138] sm:$0xff]
      %v337 = vld [vmem:[%s3 + $0x140] sm:$0xff]
      %v338 = vld [vmem:[%s3 + $0x148] sm:$0xff]
      %v339 = vld [vmem:[%s3 + $0x150] sm:$0xff]
      %v340 = vld [vmem:[%s3 + $0x158] sm:$0xff]
      %v341 = vld [vmem:[%s3 + $0x160] sm:$0xff]
      %v342 = vld [vmem:[%s3 + $0x168] sm:$0xff]
      %v343 = vld [vmem:[%s3 + $0x170] sm:$0xff]
      %v344 = vld [vmem:[%s3 + $0x178] sm:$0xff]
      %v345 = vld [vmem:[%s3 + $0x180] sm:$0xff]
      %v346 = vld [vmem:[%s3 + $0x188] sm:$0xff]
      %v347 = vld [vmem:[%s3 + $0x190] sm:$0xff]
      %v348 = vld [vmem:[%s3 + $0x198] sm:$0xff]
      %v349 = vld [vmem:[%s3 + $0x1a0] sm:$0xff]
      %v350 = vld [vmem:[%s3 + $0x1a8] sm:$0xff]
      %v351 = vld [vmem:[%s3 + $0x1b0] sm:$0xff]
      %v352 = vld [vmem:[%s3 + $0x1b8] sm:$0xff]
      %v353 = vld [vmem:[%s3 + $0x1c0] sm:$0xff]
      %v354 = vld [vmem:[%s3 + $0x1c8] sm:$0xff]
      %v355 = vld [vmem:[%s3 + $0x1d0] sm:$0xff]
      %v356 = vld [vmem:[%s3 + $0x1d8] sm:$0xff]
      %v357 = vld [vmem:[%s3 + $0x1e0] sm:$0xff]
      %v358 = vld [vmem:[%s3 + $0x1e8] sm:$0xff]
      %v359 = vld [vmem:[%s3 + $0x1f0] sm:$0xff]
      %v360 = vld [vmem:[%s3 + $0x1f8] sm:$0xff]
      %v361 = vld [vmem:[%s3 + $0x200] sm:$0xff]
      %v362 = vld [vmem:[%s3 + $0x208] sm:$0xff]
      %v363 = vld [vmem:[%s3 + $0x210] sm:$0xff]
      %v364 = vld [vmem:[%s3 + $0x218] sm:$0xff]
      %v365 = vld [vmem:[%s3 + $0x220] sm:$0xff]
      %v366 = vld [vmem:[%s3 + $0x228] sm:$0xff]
      %v367 = vld [vmem:[%s3 + $0x230] sm:$0xff]
      %v368 = vld [vmem:[%s3 + $0x238] sm:$0xff]
      %v369 = vld [vmem:[%s3 + $0x240] sm:$0xff]
      %v370 = vld [vmem:[%s3 + $0x248] sm:$0xff]
      %v371 = vld [vmem:[%s3 + $0x250] sm:$0xff]
      %v372 = vld [vmem:[%s3 + $0x258] sm:$0xff]
      %v373 = vld [vmem:[%s3 + $0x260] sm:$0xff]
      %v374 = vld [vmem:[%s3 + $0x268] sm:$0xff]
      %v375 = vld [vmem:[%s3 + $0x270] sm:$0xff]
      %v376 = vld [vmem:[%s3 + $0x278] sm:$0xff]
      %v377 = vld [vmem:[%s3 + $0x280] sm:$0xff]
      %v378 = vld [vmem:[%s3 + $0x288] sm:$0xff]
      %v379 = vld [vmem:[%s3 + $0x290] sm:$0xff]
      %v380 = vld [vmem:[%s3 + $0x298] sm:$0xff]
      %v381 = vld [vmem:[%s3 + $0x2a0] sm:$0xff]
      %v382 = vld [vmem:[%s3 + $0x2a8] sm:$0xff]
      %v383 = vld [vmem:[%s3 + $0x2b0] sm:$0xff]
      %v384 = vld [vmem:[%s3 + $0x2b8] sm:$0xff]
      %v385 = vld [vmem:[%s3 + $0x2c0] sm:$0xff]
      %v386 = vld [vmem:[%s3 + $0x2c8] sm:$0xff]
      %v387 = vld [vmem:[%s3 + $0x2d0] sm:$0xff]
      %v388 = vld [vmem:[%s3 + $0x2d8] sm:$0xff]
      %v389 = vld [vmem:[%s3 + $0x2e0] sm:$0xff]
      %v390 = vld [vmem:[%s3 + $0x2e8] sm:$0xff]
      %v391 = vld [vmem:[%s3 + $0x2f0] sm:$0xff]
      %v392 = vld [vmem:[%s3 + $0x2f8] sm:$0xff]
      %v393 = vld [vmem:[%s3 + $0x300] sm:$0xff]
      %v394 = vld [vmem:[%s3 + $0x308] sm:$0xff]
      %v395 = vld [vmem:[%s3 + $0x310] sm:$0xff]
      %v396 = vld [vmem:[%s3 + $0x318] sm:$0xff]
      %v397 = vld [vmem:[%s3 + $0x320] sm:$0xff]
      %v398 = vld [vmem:[%s3 + $0x328] sm:$0xff]
      %v399 = vld [vmem:[%s3 + $0x330] sm:$0xff]
      %v400 = vld [vmem:[%s3 + $0x338] sm:$0xff]
      %v401 = vld [vmem:[%s3 + $0x340] sm:$0xff]
      %v402 = vld [vmem:[%s3 + $0x348] sm:$0xff]
      %v403 = vld [vmem:[%s3 + $0x350] sm:$0xff]
      %v404 = vld [vmem:[%s3 + $0x358] sm:$0xff]
      %v405 = vld [vmem:[%s3 + $0x360] sm:$0xff]
      %v406 = vld [vmem:[%s3 + $0x368] sm:$0xff]
      %v407 = vld [vmem:[%s3 + $0x370] sm:$0xff]
      %v408 = vld [vmem:[%s3 + $0x378] sm:$0xff]
      %v409 = vld [vmem:[%s3 + $0x380] sm:$0xff]
      %v410 = vld [vmem:[%s3 + $0x388] sm:$0xff]
      %v411 = vld [vmem:[%s3 + $0x390] sm:$0xff]
      %v412 = vld [vmem:[%s3 + $0x398] sm:$0xff]
      %v413 = vld [vmem:[%s3 + $0x3a0] sm:$0xff]
      %v414 = vld [vmem:[%s3 + $0x3a8] sm:$0xff]
      %v415 = vld [vmem:[%s3 + $0x3b0] sm:$0xff]
      %v416 = vld [vmem:[%s3 + $0x3b8] sm:$0xff]
      %v417 = vld [vmem:[%s3 + $0x3c0] sm:$0xff]
      %v418 = vld [vmem:[%s3 + $0x3c8] sm:$0xff]
      %v419 = vld [vmem:[%s3 + $0x3d0] sm:$0xff]
      %v420 = vld [vmem:[%s3 + $0x3d8] sm:$0xff]
      %v421 = vld [vmem:[%s3 + $0x3e0] sm:$0xff]
      %v422 = vld [vmem:[%s3 + $0x3e8] sm:$0xff]
      %v423 = vld [vmem:[%s3 + $0x3f0] sm:$0xff]
      %v424 = vld [vmem:[%s3 + $0x3f8] sm:$0xff]
      %v425 = vld [vmem:[%s3 + $0x400] sm:$0xff]
      %v426 = vld [vmem:[%s3 + $0x408] sm:$0xff]
      %v427 = vld [vmem:[%s3 + $0x410] sm:$0xff]
      %v428 = vld [vmem:[%s3 + $0x418] sm:$0xff]
      %v429 = vld [vmem:[%s3 + $0x420] sm:$0xff]
      %v430 = vld [vmem:[%s3 + $0x428] sm:$0xff]
      %v431 = vld [vmem:[%s3 + $0x430] sm:$0xff]
      %v432 = vld [vmem:[%s3 + $0x438] sm:$0xff]
      %v433 = vld [vmem:[%s3 + $0x440] sm:$0xff]
      %v434 = vld [vmem:[%s3 + $0x448] sm:$0xff]
      %v435 = vld [vmem:[%s3 + $0x450] sm:$0xff]
      %v436 = vld [vmem:[%s3 + $0x458] sm:$0xff]
      %v437 = vld [vmem:[%s3 + $0x460] sm:$0xff]
      %v438 = vld [vmem:[%s3 + $0x468] sm:$0xff]
      %v439 = vld [vmem:[%s3 + $0x470] sm:$0xff]
      %v440 = vld [vmem:[%s3 + $0x478] sm:$0xff]
      %v441 = vld [vmem:[%s3 + $0x480] sm:$0xff]
      %v442 = vld [vmem:[%s3 + $0x488] sm:$0xff]
      %v443 = vld [vmem:[%s3 + $0x490] sm:$0xff]
      %v444 = vld [vmem:[%s3 + $0x498] sm:$0xff]
      %v445 = vld [vmem:[%s3 + $0x4a0] sm:$0xff]
      %v446 = vld [vmem:[%s3 + $0x4a8] sm:$0xff]
      %v447 = vld [vmem:[%s3 + $0x4b0] sm:$0xff]
      %v448 = vld [vmem:[%s3 + $0x4b8] sm:$0xff]
      %v449 = vld [vmem:[%s3 + $0x4c0] sm:$0xff]
      %v450 = vld [vmem:[%s3 + $0x4c8] sm:$0xff]
      %v451 = vld [vmem:[%s3 + $0x4d0] sm:$0xff]
      %v452 = vld [vmem:[%s3 + $0x4d8] sm:$0xff]
      %v453 = vld [vmem:[%s3 + $0x4e0] sm:$0xff]
      %v454 = vld [vmem:[%s3 + $0x4e8] sm:$0xff]
      %v455 = vld [vmem:[%s3 + $0x4f0] sm:$0xff]
      %v456 = vld [vmem:[%s3 + $0x4f8] sm:$0xff]
      %v457 = vld [vmem:[%s3 + $0x500] sm:$0xff]
      %v458 = vld [vmem:[%s3 + $0x508] sm:$0xff]
      %v459 = vld [vmem:[%s3 + $0x510] sm:$0xff]
      %v460 = vld [vmem:[%s3 + $0x518] sm:$0xff]
      %v461 = vld [vmem:[%s3 + $0x520] sm:$0xff]
      %v462 = vld [vmem:[%s3 + $0x528] sm:$0xff]
      %v463 = vld [vmem:[%s3 + $0x530] sm:$0xff]
      %v464 = vld [vmem:[%s3 + $0x538] sm:$0xff]
      %v465 = vld [vmem:[%s3 + $0x540] sm:$0xff]
      %v466 = vld [vmem:[%s3 + $0x548] sm:$0xff]
      %v467 = vld [vmem:[%s3 + $0x550] sm:$0xff]
      %v468 = vld [vmem:[%s3 + $0x558] sm:$0xff]
      %v469 = vld [vmem:[%s3 + $0x560] sm:$0xff]
      %v470 = vld [vmem:[%s3 + $0x568] sm:$0xff]
      %v471 = vld [vmem:[%s3 + $0x570] sm:$0xff]
      %v472 = vld [vmem:[%s3 + $0x578] sm:$0xff]
      %v473 = vld [vmem:[%s3 + $0x580] sm:$0xff]
      %v474 = vld [vmem:[%s3 + $0x588] sm:$0xff]
      %v475 = vld [vmem:[%s3 + $0x590] sm:$0xff]
      %v476 = vld [vmem:[%s3 + $0x598] sm:$0xff]
      %v477 = vld [vmem:[%s3 + $0x5a0] sm:$0xff]
      %v478 = vld [vmem:[%s3 + $0x5a8] sm:$0xff]
      %v479 = vld [vmem:[%s3 + $0x5b0] sm:$0xff]
      %v480 = vld [vmem:[%s3 + $0x5b8] sm:$0xff]
      %v481 = vld [vmem:[%s3 + $0x5c0] sm:$0xff]
      %v482 = vld [vmem:[%s3 + $0x5c8] sm:$0xff]
      %v483 = vld [vmem:[%s3 + $0x5d0] sm:$0xff]
      %v484 = vld [vmem:[%s3 + $0x5d8] sm:$0xff]
      %v485 = vld [vmem:[%s3 + $0x5e0] sm:$0xff]
      %v486 = vld [vmem:[%s3 + $0x5e8] sm:$0xff]
      %v487 = vld [vmem:[%s3 + $0x5f0] sm:$0xff]
      %v488 = vld [vmem:[%s3 + $0x5f8] sm:$0xff]
      %v489 = vld [vmem:[%s3 + $0x600] sm:$0xff]
      %v490 = vld [vmem:[%s3 + $0x608] sm:$0xff]
      %v491 = vld [vmem:[%s3 + $0x610] sm:$0xff]
      %v492 = vld [vmem:[%s3 + $0x618] sm:$0xff]
      %v493 = vld [vmem:[%s3 + $0x620] sm:$0xff]
      %v494 = vld [vmem:[%s3 + $0x628] sm:$0xff]
      %v495 = vld [vmem:[%s3 + $0x630] sm:$0xff]
      %v496 = vld [vmem:[%s3 + $0x638] sm:$0xff]
      %v497 = vld [vmem:[%s3 + $0x640] sm:$0xff]
      %v498 = vld [vmem:[%s3 + $0x648] sm:$0xff]
      %v499 = vld [vmem:[%s3 + $0x650] sm:$0xff]
      %v500 = vld [vmem:[%s3 + $0x658] sm:$0xff]
      %v501 = vld [vmem:[%s3 + $0x660] sm:$0xff]
      %v502 = vld [vmem:[%s3 + $0x668] sm:$0xff]
      %v503 = vld [vmem:[%s3 + $0x670] sm:$0xff]
      %v504 = vld [vmem:[%s3 + $0x678] sm:$0xff]
      %v505 = vld [vmem:[%s3 + $0x680] sm:$0xff]
      %v506 = vld [vmem:[%s3 + $0x688] sm:$0xff]
      %v507 = vld [vmem:[%s3 + $0x690] sm:$0xff]
      %v508 = vld [vmem:[%s3 + $0x698] sm:$0xff]
      %v509 = vld [vmem:[%s3 + $0x6a0] sm:$0xff]
      %v510 = vld [vmem:[%s3 + $0x6a8] sm:$0xff]
      %v511 = vld [vmem:[%s3 + $0x6b0] sm:$0xff]
      %v512 = vld [vmem:[%s3 + $0x6b8] sm:$0xff]
      %v513 = vld [vmem:[%s3 + $0x6c0] sm:$0xff]
      %v514 = vld [vmem:[%s3 + $0x6c8] sm:$0xff]
      %v515 = vld [vmem:[%s3 + $0x6d0] sm:$0xff]
      %v516 = vld [vmem:[%s3 + $0x6d8] sm:$0xff]
      %v517 = vld [vmem:[%s3 + $0x6e0] sm:$0xff]
      %v518 = vld [vmem:[%s3 + $0x6e8] sm:$0xff]
      %v519 = vld [vmem:[%s3 + $0x6f0] sm:$0xff]
      %v520 = vld [vmem:[%s3 + $0x6f8] sm:$0xff]
      %v521 = vld [vmem:[%s3 + $0x700] sm:$0xff]
      %v522 = vld [vmem:[%s3 + $0x708] sm:$0xff]
      %v523 = vld [vmem:[%s3 + $0x710] sm:$0xff]
      %v524 = vld [vmem:[%s3 + $0x718] sm:$0xff]
      %v525 = vld [vmem:[%s3 + $0x720] sm:$0xff]
      %v526 = vld [vmem:[%s3 + $0x728] sm:$0xff]
      %v527 = vld [vmem:[%s3 + $0x730] sm:$0xff]
      %v528 = vld [vmem:[%s3 + $0x738] sm:$0xff]
      %v529 = vld [vmem:[%s3 + $0x740] sm:$0xff]
      %v530 = vld [vmem:[%s3 + $0x748] sm:$0xff]
      %v531 = vld [vmem:[%s3 + $0x750] sm:$0xff]
      %v532 = vld [vmem:[%s3 + $0x758] sm:$0xff]
      %v533 = vld [vmem:[%s3 + $0x760] sm:$0xff]
      %v534 = vld [vmem:[%s3 + $0x768] sm:$0xff]
      %v535 = vld [vmem:[%s3 + $0x770] sm:$0xff]
      %v536 = vld [vmem:[%s3 + $0x778] sm:$0xff]
      %537 = vmatprep.subr.mxu0 %v343
      %538 = vmatpush1.msra.mxu0 %v342
      %539 = vmatprep.subr.mxu0 %v340
      %540 = vmatpush1.msra.mxu0 %v339
      %541 = vmatprep.subr.mxu0 %v337
      %542 = vmatpush1.msra.mxu0 %v336
      %543 = vmatprep.subr.mxu0 %v334
      %544 = vmatpush1.msra.mxu0 %v333
      %545 = vmatprep.subr.mxu0 %v331
      %546 = vmatpush1.msra.mxu0 %v330
      %547 = vmatprep.subr.mxu0 %v328
      %548 = vmatpush1.msra.mxu0 %v327
      %549 = vmatprep.subr.mxu0 %v325
      %550 = vmatpush1.msra.mxu0 %v324
      %551 = vmatprep.subr.mxu0 %v322
      %552 = vmatpush1.msra.mxu0 %v321
      %553 = vmatprep.subr.mxu0 %v319
      %554 = vmatpush1.msra.mxu0 %v318
      %555 = vmatprep.subr.mxu0 %v316
      %556 = vmatpush1.msra.mxu0 %v315
      %557 = vmatprep.subr.mxu0 %v313
      %558 = vmatpush1.msra.mxu0 %v312
      %559 = vmatprep.subr.mxu0 %v310
      %560 = vmatpush1.msra.mxu0 %v309
      %561 = vmatprep.subr.mxu0 %v307
      %562 = vmatpush1.msra.mxu0 %v306
      %563 = vmatprep.subr.mxu0 %v304
      %564 = vmatpush1.msra.mxu0 %v303
      %565 = vmatprep.subr.mxu0 %v301
      %566 = vmatpush1.msra.mxu0 %v300
      %567 = vmatprep.subr.mxu0 %v298
      %568 = vmatpush1.msra.mxu0 %v297
      %569 = vmatprep.subr.mxu0 %v391
      %570 = vmatpush2.msra.mxu0 %v390
      %571 = vmatprep.subr.mxu0 %v388
      %572 = vmatpush2.msra.mxu0 %v387
      %573 = vmatprep.subr.mxu0 %v385
      %574 = vmatpush2.msra.mxu0 %v384
      %575 = vmatprep.subr.mxu0 %v382
      %576 = vmatpush2.msra.mxu0 %v381
      %577 = vmatprep.subr.mxu0 %v379
      %578 = vmatpush2.msra.mxu0 %v378
      %579 = vmatprep.subr.mxu0 %v376
      %580 = vmatpush2.msra.mxu0 %v375
      %581 = vmatprep.subr.mxu0 %v373
      %582 = vmatpush2.msra.mxu0 %v372
      %583 = vmatprep.subr.mxu0 %v370
      %584 = vmatpush2.msra.mxu0 %v369
      %585 = vmatprep.subr.mxu0 %v367
      %586 = vmatpush2.msra.mxu0 %v366
      %587 = vmatprep.subr.mxu0 %v364
      %588 = vmatpush2.msra.mxu0 %v363
      %589 = vmatprep.subr.mxu0 %v361
      %590 = vmatpush2.msra.mxu0 %v360
      %591 = vmatprep.subr.mxu0 %v358
      %592 = vmatpush2.msra.mxu0 %v357
      %593 = vmatprep.subr.mxu0 %v355
      %594 = vmatpush2.msra.mxu0 %v354
      %595 = vmatprep.subr.mxu0 %v352
      %596 = vmatpush2.msra.mxu0 %v351
      %597 = vmatprep.subr.mxu0 %v349
      %598 = vmatpush2.msra.mxu0 %v348
      %599 = vmatprep.subr.mxu0 %v346
      %600 = vmatpush2.msra.mxu0 %v345
      %601 = vmatprep.mubr.f32.mxu0 %v270
      %602 = vmatmul.mubr.f32.gmra.mxu0 %v269
      %v603 = vpop.f32.mrf.mxu0
      %v604 = vadd.f32 0.0, %v603
      %v605 = vpop.f32.mrf.mxu0
      %v606 = vadd.f32 0.0, %v605
      %607 = vmatprep.mubr.f32.mxu0 %v275
      %608 = vmatmul.mubr.f32.gmra.mxu0 %v274
      %v609 = vpop.f32.mrf.mxu0
      %v610 = vadd.f32 0.0, %v609
      %v611 = vpop.f32.mrf.mxu0
      %v612 = vadd.f32 0.0, %v611
      %613 = vdwg.mxu0
      %614 = vmatprep.subr.mxu0 %v439
      %615 = vmatpush1.msra.mxu0 %v438
      %616 = vmatprep.subr.mxu0 %v436
      %617 = vmatpush1.msra.mxu0 %v435
      %618 = vmatprep.subr.mxu0 %v433
      %619 = vmatpush1.msra.mxu0 %v432
      %620 = vmatprep.subr.mxu0 %v430
      %621 = vmatpush1.msra.mxu0 %v429
      %622 = vmatprep.subr.mxu0 %v427
      %623 = vmatpush1.msra.mxu0 %v426
      %624 = vmatprep.subr.mxu0 %v424
      %625 = vmatpush1.msra.mxu0 %v423
      %626 = vmatprep.subr.mxu0 %v421
      %627 = vmatpush1.msra.mxu0 %v420
      %628 = vmatprep.subr.mxu0 %v418
      %629 = vmatpush1.msra.mxu0 %v417
      %630 = vmatprep.subr.mxu0 %v415
      %631 = vmatpush1.msra.mxu0 %v414
      %632 = vmatprep.subr.mxu0 %v412
      %633 = vmatpush1.msra.mxu0 %v411
      %634 = vmatprep.subr.mxu0 %v409
      %635 = vmatpush1.msra.mxu0 %v408
      %636 = vmatprep.subr.mxu0 %v406
      %637 = vmatpush1.msra.mxu0 %v405
      %638 = vmatprep.subr.mxu0 %v403
      %639 = vmatpush1.msra.mxu0 %v402
      %640 = vmatprep.subr.mxu0 %v400
      %641 = vmatpush1.msra.mxu0 %v399
      %642 = vmatprep.subr.mxu0 %v397
      %643 = vmatpush1.msra.mxu0 %v396
      %644 = vmatprep.subr.mxu0 %v394
      %645 = vmatpush1.msra.mxu0 %v393
      %646 = vmatprep.subr.mxu0 %v487
      %647 = vmatpush2.msra.mxu0 %v486
      %648 = vmatprep.subr.mxu0 %v484
      %649 = vmatpush2.msra.mxu0 %v483
      %650 = vmatprep.subr.mxu0 %v481
      %651 = vmatpush2.msra.mxu0 %v480
      %652 = vmatprep.subr.mxu0 %v478
      %653 = vmatpush2.msra.mxu0 %v477
      %654 = vmatprep.subr.mxu0 %v475
      %655 = vmatpush2.msra.mxu0 %v474
      %656 = vmatprep.subr.mxu0 %v472
      %657 = vmatpush2.msra.mxu0 %v471
      %658 = vmatprep.subr.mxu0 %v469
      %659 = vmatpush2.msra.mxu0 %v468
      %660 = vmatprep.subr.mxu0 %v466
      %661 = vmatpush2.msra.mxu0 %v465
      %662 = vmatprep.subr.mxu0 %v463
      %663 = vmatpush2.msra.mxu0 %v462
      %664 = vmatprep.subr.mxu0 %v460
      %665 = vmatpush2.msra.mxu0 %v459
      %666 = vmatprep.subr.mxu0 %v457
      %667 = vmatpush2.msra.mxu0 %v456
      %668 = vmatprep.subr.mxu0 %v454
      %669 = vmatpush2.msra.mxu0 %v453
      %670 = vmatprep.subr.mxu0 %v451
      %671 = vmatpush2.msra.mxu0 %v450
      %672 = vmatprep.subr.mxu0 %v448
      %673 = vmatpush2.msra.mxu0 %v447
      %674 = vmatprep.subr.mxu0 %v445
      %675 = vmatpush2.msra.mxu0 %v444
      %676 = vmatprep.subr.mxu0 %v442
      %677 = vmatpush2.msra.mxu0 %v441
      %678 = vmatprep.mubr.f32.mxu0 %v272
      %679 = vmatmul.mubr.f32.gmra.mxu0 %v271
      %v680 = vpop.f32.mrf.mxu0
      %v681 = vadd.f32 %v604, %v680
      %v682 = vpop.f32.mrf.mxu0
      %v683 = vadd.f32 %v606, %v682
      %684 = vmatprep.mubr.f32.mxu0 %v277
      %685 = vmatmul.mubr.f32.gmra.mxu0 %v276
      %v686 = vpop.f32.mrf.mxu0
      %v687 = vadd.f32 %v610, %v686
      %v688 = vpop.f32.mrf.mxu0
      %v689 = vadd.f32 %v612, %v688
      %690 = vdwg.mxu0
      %691 = vmatprep.subr.mxu0 %v535
      %692 = vmatpush1.msra.mxu0 %v534
      %693 = vmatprep.subr.mxu0 %v532
      %694 = vmatpush1.msra.mxu0 %v531
      %695 = vmatprep.subr.mxu0 %v529
      %696 = vmatpush1.msra.mxu0 %v528
      %697 = vmatprep.subr.mxu0 %v526
      %698 = vmatpush1.msra.mxu0 %v525
      %699 = vmatprep.subr.mxu0 %v523
      %700 = vmatpush1.msra.mxu0 %v522
      %701 = vmatprep.subr.mxu0 %v520
      %702 = vmatpush1.msra.mxu0 %v519
      %703 = vmatprep.subr.mxu0 %v517
      %704 = vmatpush1.msra.mxu0 %v516
      %705 = vmatprep.subr.mxu0 %v514
      %706 = vmatpush1.msra.mxu0 %v513
      %707 = vmatprep.subr.mxu0 %v511
      %708 = vmatpush1.msra.mxu0 %v510
      %709 = vmatprep.subr.mxu0 %v508
      %710 = vmatpush1.msra.mxu0 %v507
      %711 = vmatprep.subr.mxu0 %v505
      %712 = vmatpush1.msra.mxu0 %v504
      %713 = vmatprep.subr.mxu0 %v502
      %714 = vmatpush1.msra.mxu0 %v501
      %715 = vmatprep.subr.mxu0 %v499
      %716 = vmatpush1.msra.mxu0 %v498
      %717 = vmatprep.subr.mxu0 %v496
      %718 = vmatpush1.msra.mxu0 %v495
      %719 = vmatprep.subr.mxu0 %v493
      %720 = vmatpush1.msra.mxu0 %v492
      %721 = vmatprep.subr.mxu0 %v490
      %722 = vmatpush1.msra.mxu0 %v489
      %723 = vmatprep.subr.mxu0 0.0
      %724 = vmatpush2.msra.mxu0 0.0
      %725 = vmatprep.subr.mxu0 0.0
      %726 = vmatpush2.msra.mxu0 0.0
      %727 = vmatprep.subr.mxu0 0.0
      %728 = vmatpush2.msra.mxu0 0.0
      %729 = vmatprep.subr.mxu0 0.0
      %730 = vmatpush2.msra.mxu0 0.0
      %731 = vmatprep.subr.mxu0 0.0
      %732 = vmatpush2.msra.mxu0 0.0
      %733 = vmatprep.subr.mxu0 0.0
      %734 = vmatpush2.msra.mxu0 0.0
      %735 = vmatprep.subr.mxu0 0.0
      %736 = vmatpush2.msra.mxu0 0.0
      %737 = vmatprep.subr.mxu0 0.0
      %738 = vmatpush2.msra.mxu0 0.0
      %739 = vmatprep.subr.mxu0 0.0
      %740 = vmatpush2.msra.mxu0 0.0
      %741 = vmatprep.subr.mxu0 0.0
      %742 = vmatpush2.msra.mxu0 0.0
      %743 = vmatprep.subr.mxu0 0.0
      %744 = vmatpush2.msra.mxu0 0.0
      %745 = vmatprep.subr.mxu0 0.0
      %746 = vmatpush2.msra.mxu0 0.0
      %747 = vmatprep.subr.mxu0 0.0
      %748 = vmatpush2.msra.mxu0 0.0
      %749 = vmatprep.subr.mxu0 0.0
      %750 = vmatpush2.msra.mxu0 0.0
      %751 = vmatprep.subr.mxu0 0.0
      %752 = vmatpush2.msra.mxu0 0.0
      %753 = vmatprep.subr.mxu0 0.0
      %754 = vmatpush2.msra.mxu0 0.0
      %755 = vmatprep.mubr.f32.mxu0 0.0
      %756 = vmatmul.mubr.f32.gmra.mxu0 %v273
      %v757 = vpop.f32.mrf.mxu0
      %v758 = vadd.f32 %v681, %v757
      %v759 = vpop.f32.mrf.mxu0
      %v760 = vadd.f32 %v683, %v759
      %761 = vmatprep.mubr.f32.mxu0 0.0
      %762 = vmatmul.mubr.f32.gmra.mxu0 %v278
      %v763 = vpop.f32.mrf.mxu0
      %v764 = vadd.f32 %v687, %v763
      %v765 = vpop.f32.mrf.mxu0
      %v766 = vadd.f32 %v689, %v765
      %767 = vdwg.mxu0
      %768 = vmatprep.subr.mxu0 0.0
      %769 = vmatpush1.msra.mxu0 %v344
      %770 = vmatprep.subr.mxu0 0.0
      %771 = vmatpush1.msra.mxu0 %v341
      %772 = vmatprep.subr.mxu0 0.0
      %773 = vmatpush1.msra.mxu0 %v338
      %774 = vmatprep.subr.mxu0 0.0
      %775 = vmatpush1.msra.mxu0 %v335
      %776 = vmatprep.subr.mxu0 0.0
      %777 = vmatpush1.msra.mxu0 %v332
      %778 = vmatprep.subr.mxu0 0.0
      %779 = vmatpush1.msra.mxu0 %v329
      %780 = vmatprep.subr.mxu0 0.0
      %781 = vmatpush1.msra.mxu0 %v326
      %782 = vmatprep.subr.mxu0 0.0
      %783 = vmatpush1.msra.mxu0 %v323
      %784 = vmatprep.subr.mxu0 0.0
      %785 = vmatpush1.msra.mxu0 %v320
      %786 = vmatprep.subr.mxu0 0.0
      %787 = vmatpush1.msra.mxu0 %v317
      %788 = vmatprep.subr.mxu0 0.0
      %789 = vmatpush1.msra.mxu0 %v314
      %790 = vmatprep.subr.mxu0 0.0
      %791 = vmatpush1.msra.mxu0 %v311
      %792 = vmatprep.subr.mxu0 0.0
      %793 = vmatpush1.msra.mxu0 %v308
      %794 = vmatprep.subr.mxu0 0.0
      %795 = vmatpush1.msra.mxu0 %v305
      %796 = vmatprep.subr.mxu0 0.0
      %797 = vmatpush1.msra.mxu0 %v302
      %798 = vmatprep.subr.mxu0 0.0
      %799 = vmatpush1.msra.mxu0 %v299
      %800 = vmatprep.subr.mxu0 0.0
      %801 = vmatpush2.msra.mxu0 %v392
      %802 = vmatprep.subr.mxu0 0.0
      %803 = vmatpush2.msra.mxu0 %v389
      %804 = vmatprep.subr.mxu0 0.0
      %805 = vmatpush2.msra.mxu0 %v386
      %806 = vmatprep.subr.mxu0 0.0
      %807 = vmatpush2.msra.mxu0 %v383
      %808 = vmatprep.subr.mxu0 0.0
      %809 = vmatpush2.msra.mxu0 %v380
      %810 = vmatprep.subr.mxu0 0.0
      %811 = vmatpush2.msra.mxu0 %v377
      %812 = vmatprep.subr.mxu0 0.0
      %813 = vmatpush2.msra.mxu0 %v374
      %814 = vmatprep.subr.mxu0 0.0
      %815 = vmatpush2.msra.mxu0 %v371
      %816 = vmatprep.subr.mxu0 0.0
      %817 = vmatpush2.msra.mxu0 %v368
      %818 = vmatprep.subr.mxu0 0.0
      %819 = vmatpush2.msra.mxu0 %v365
      %820 = vmatprep.subr.mxu0 0.0
      %821 = vmatpush2.msra.mxu0 %v362
      %822 = vmatprep.subr.mxu0 0.0
      %823 = vmatpush2.msra.mxu0 %v359
      %824 = vmatprep.subr.mxu0 0.0
      %825 = vmatpush2.msra.mxu0 %v356
      %826 = vmatprep.subr.mxu0 0.0
      %827 = vmatpush2.msra.mxu0 %v353
      %828 = vmatprep.subr.mxu0 0.0
      %829 = vmatpush2.msra.mxu0 %v350
      %830 = vmatprep.subr.mxu0 0.0
      %831 = vmatpush2.msra.mxu0 %v347
      %832 = vmatprep.mubr.f32.mxu0 %v270
      %833 = vmatmul.mubr.f32.gmra.mxu0 %v269
      %v834 = vpop.f32.mrf.mxu0
      %v835 = vadd.f32 0.0, %v834
      %v836 = vpop.f32.mrf.mxu0
      %837 = vmatprep.mubr.f32.mxu0 %v275
      %838 = vmatmul.mubr.f32.gmra.mxu0 %v274
      %v839 = vpop.f32.mrf.mxu0
      %v840 = vadd.f32 0.0, %v839
      %v841 = vpop.f32.mrf.mxu0
      %842 = vdwg.mxu0
      %843 = vmatprep.subr.mxu0 0.0
      %844 = vmatpush1.msra.mxu0 %v440
      %845 = vmatprep.subr.mxu0 0.0
      %846 = vmatpush1.msra.mxu0 %v437
      %847 = vmatprep.subr.mxu0 0.0
      %848 = vmatpush1.msra.mxu0 %v434
      %849 = vmatprep.subr.mxu0 0.0
      %850 = vmatpush1.msra.mxu0 %v431
      %851 = vmatprep.subr.mxu0 0.0
      %852 = vmatpush1.msra.mxu0 %v428
      %853 = vmatprep.subr.mxu0 0.0
      %854 = vmatpush1.msra.mxu0 %v425
      %855 = vmatprep.subr.mxu0 0.0
      %856 = vmatpush1.msra.mxu0 %v422
      %857 = vmatprep.subr.mxu0 0.0
      %858 = vmatpush1.msra.mxu0 %v419
      %859 = vmatprep.subr.mxu0 0.0
      %860 = vmatpush1.msra.mxu0 %v416
      %861 = vmatprep.subr.mxu0 0.0
      %862 = vmatpush1.msra.mxu0 %v413
      %863 = vmatprep.subr.mxu0 0.0
      %864 = vmatpush1.msra.mxu0 %v410
      %865 = vmatprep.subr.mxu0 0.0
      %866 = vmatpush1.msra.mxu0 %v407
      %867 = vmatprep.subr.mxu0 0.0
      %868 = vmatpush1.msra.mxu0 %v404
      %869 = vmatprep.subr.mxu0 0.0
      %870 = vmatpush1.msra.mxu0 %v401
      %871 = vmatprep.subr.mxu0 0.0
      %872 = vmatpush1.msra.mxu0 %v398
      %873 = vmatprep.subr.mxu0 0.0
      %874 = vmatpush1.msra.mxu0 %v395
      %875 = vmatprep.subr.mxu0 0.0
      %876 = vmatpush2.msra.mxu0 %v488
      %877 = vmatprep.subr.mxu0 0.0
      %878 = vmatpush2.msra.mxu0 %v485
      %879 = vmatprep.subr.mxu0 0.0
      %880 = vmatpush2.msra.mxu0 %v482
      %881 = vmatprep.subr.mxu0 0.0
      %882 = vmatpush2.msra.mxu0 %v479
      %883 = vmatprep.subr.mxu0 0.0
      %884 = vmatpush2.msra.mxu0 %v476
      %885 = vmatprep.subr.mxu0 0.0
      %886 = vmatpush2.msra.mxu0 %v473
      %887 = vmatprep.subr.mxu0 0.0
      %888 = vmatpush2.msra.mxu0 %v470
      %889 = vmatprep.subr.mxu0 0.0
      %890 = vmatpush2.msra.mxu0 %v467
      %891 = vmatprep.subr.mxu0 0.0
      %892 = vmatpush2.msra.mxu0 %v464
      %893 = vmatprep.subr.mxu0 0.0
      %894 = vmatpush2.msra.mxu0 %v461
      %895 = vmatprep.subr.mxu0 0.0
      %896 = vmatpush2.msra.mxu0 %v458
      %897 = vmatprep.subr.mxu0 0.0
      %898 = vmatpush2.msra.mxu0 %v455
      %899 = vmatprep.subr.mxu0 0.0
      %900 = vmatpush2.msra.mxu0 %v452
      %901 = vmatprep.subr.mxu0 0.0
      %902 = vmatpush2.msra.mxu0 %v449
      %903 = vmatprep.subr.mxu0 0.0
      %904 = vmatpush2.msra.mxu0 %v446
      %905 = vmatprep.subr.mxu0 0.0
      %906 = vmatpush2.msra.mxu0 %v443
      %907 = vmatprep.mubr.f32.mxu0 %v272
      %908 = vmatmul.mubr.f32.gmra.mxu0 %v271
      %v909 = vpop.f32.mrf.mxu0
      %v910 = vadd.f32 %v835, %v909
      %v911 = vpop.f32.mrf.mxu0
      %912 = vmatprep.mubr.f32.mxu0 %v277
      %913 = vmatmul.mubr.f32.gmra.mxu0 %v276
      %v914 = vpop.f32.mrf.mxu0
      %v915 = vadd.f32 %v840, %v914
      %v916 = vpop.f32.mrf.mxu0
      %917 = vdwg.mxu0
      %918 = vmatprep.subr.mxu0 0.0
      %919 = vmatpush1.msra.mxu0 %v536
      %920 = vmatprep.subr.mxu0 0.0
      %921 = vmatpush1.msra.mxu0 %v533
      %922 = vmatprep.subr.mxu0 0.0
      %923 = vmatpush1.msra.mxu0 %v530
      %924 = vmatprep.subr.mxu0 0.0
      %925 = vmatpush1.msra.mxu0 %v527
      %926 = vmatprep.subr.mxu0 0.0
      %927 = vmatpush1.msra.mxu0 %v524
      %928 = vmatprep.subr.mxu0 0.0
      %929 = vmatpush1.msra.mxu0 %v521
      %930 = vmatprep.subr.mxu0 0.0
      %931 = vmatpush1.msra.mxu0 %v518
      %932 = vmatprep.subr.mxu0 0.0
      %933 = vmatpush1.msra.mxu0 %v515
      %934 = vmatprep.subr.mxu0 0.0
      %935 = vmatpush1.msra.mxu0 %v512
      %936 = vmatprep.subr.mxu0 0.0
      %937 = vmatpush1.msra.mxu0 %v509
      %938 = vmatprep.subr.mxu0 0.0
      %939 = vmatpush1.msra.mxu0 %v506
      %940 = vmatprep.subr.mxu0 0.0
      %941 = vmatpush1.msra.mxu0 %v503
      %942 = vmatprep.subr.mxu0 0.0
      %943 = vmatpush1.msra.mxu0 %v500
      %944 = vmatprep.subr.mxu0 0.0
      %945 = vmatpush1.msra.mxu0 %v497
      %946 = vmatprep.subr.mxu0 0.0
      %947 = vmatpush1.msra.mxu0 %v494
      %948 = vmatprep.subr.mxu0 0.0
      %949 = vmatpush1.msra.mxu0 %v491
      %950 = vmatprep.subr.mxu0 0.0
      %951 = vmatpush2.msra.mxu0 0.0
      %952 = vmatprep.subr.mxu0 0.0
      %953 = vmatpush2.msra.mxu0 0.0
      %954 = vmatprep.subr.mxu0 0.0
      %955 = vmatpush2.msra.mxu0 0.0
      %956 = vmatprep.subr.mxu0 0.0
      %957 = vmatpush2.msra.mxu0 0.0
      %958 = vmatprep.subr.mxu0 0.0
      %959 = vmatpush2.msra.mxu0 0.0
      %960 = vmatprep.subr.mxu0 0.0
      %961 = vmatpush2.msra.mxu0 0.0
      %962 = vmatprep.subr.mxu0 0.0
      %963 = vmatpush2.msra.mxu0 0.0
      %964 = vmatprep.subr.mxu0 0.0
      %965 = vmatpush2.msra.mxu0 0.0
      %966 = vmatprep.subr.mxu0 0.0
      %967 = vmatpush2.msra.mxu0 0.0
      %968 = vmatprep.subr.mxu0 0.0
      %969 = vmatpush2.msra.mxu0 0.0
      %970 = vmatprep.subr.mxu0 0.0
      %971 = vmatpush2.msra.mxu0 0.0
      %972 = vmatprep.subr.mxu0 0.0
      %973 = vmatpush2.msra.mxu0 0.0
      %974 = vmatprep.subr.mxu0 0.0
      %975 = vmatpush2.msra.mxu0 0.0
      %976 = vmatprep.subr.mxu0 0.0
      %977 = vmatpush2.msra.mxu0 0.0
      %978 = vmatprep.subr.mxu0 0.0
      %979 = vmatpush2.msra.mxu0 0.0
      %980 = vmatprep.subr.mxu0 0.0
      %981 = vmatpush2.msra.mxu0 0.0
      %982 = vmatprep.mubr.f32.mxu0 0.0
      %983 = vmatmul.mubr.f32.gmra.mxu0 %v273
      %v984 = vpop.f32.mrf.mxu0
      %v985 = vadd.f32 %v910, %v984
      %v986 = vpop.f32.mrf.mxu0
      %987 = vmatprep.mubr.f32.mxu0 0.0
      %988 = vmatmul.mubr.f32.gmra.mxu0 %v278
      %v989 = vpop.f32.mrf.mxu0
      %v990 = vadd.f32 %v915, %v989
      %v991 = vpop.f32.mrf.mxu0
      %992 = vdwg.mxu0
      %v993 = vrsqrt.pop %v758
      %v994 = vmul.f32 %v758, %v993
      %vm995 = vcmp.eq.f32.partialorder %v758, inf
      %v996 = vsel %vm995, %v758, %v994
      %vm997 = vcmp.eq.f32.partialorder %v758, 0.0
      %v998 = vand.u32 %v758, 2147483648
      %v999 = vsel %vm997, %v998, %v996
      %v1000 = vrsqrt.pop %v760
      %v1001 = vmul.f32 %v760, %v1000
      %vm1002 = vcmp.eq.f32.partialorder %v760, inf
      %v1003 = vsel %vm1002, %v760, %v1001
      %vm1004 = vcmp.eq.f32.partialorder %v760, 0.0
      %v1005 = vand.u32 %v760, 2147483648
      %v1006 = vsel %vm1004, %v1005, %v1003
      %v1007 = vrsqrt.pop %v985
      %v1008 = vmul.f32 %v985, %v1007
      %vm1009 = vcmp.eq.f32.partialorder %v985, inf
      %v1010 = vsel %vm1009, %v985, %v1008
      %vm1011 = vcmp.eq.f32.partialorder %v985, 0.0
      %v1012 = vand.u32 %v985, 2147483648
      %v1013 = vsel %vm1011, %v1012, %v1010
      %v1014 = vrsqrt.pop %v764
      %v1015 = vmul.f32 %v764, %v1014
      %vm1016 = vcmp.eq.f32.partialorder %v764, inf
      %v1017 = vsel %vm1016, %v764, %v1015
      %vm1018 = vcmp.eq.f32.partialorder %v764, 0.0
      %v1019 = vand.u32 %v764, 2147483648
      %v1020 = vsel %vm1018, %v1019, %v1017
      %v1021 = vrsqrt.pop %v766
      %v1022 = vmul.f32 %v766, %v1021
      %vm1023 = vcmp.eq.f32.partialorder %v766, inf
      %v1024 = vsel %vm1023, %v766, %v1022
      %vm1025 = vcmp.eq.f32.partialorder %v766, 0.0
      %v1026 = vand.u32 %v766, 2147483648
      %v1027 = vsel %vm1025, %v1026, %v1024
      %v1028 = vrsqrt.pop %v990
      %v1029 = vmul.f32 %v990, %v1028
      %vm1030 = vcmp.eq.f32.partialorder %v990, inf
      %v1031 = vsel %vm1030, %v990, %v1029
      %vm1032 = vcmp.eq.f32.partialorder %v990, 0.0
      %v1033 = vand.u32 %v990, 2147483648
      %v1034 = vsel %vm1032, %v1033, %v1031
      %v1035 = vsub.f32 %v243, %v999
      %v1036 = vsub.f32 %v244, %v1006
      %v1037 = vsub.f32 %v245, %v1013
      %v1038 = vsub.f32 %v246, %v1020
      %v1039 = vsub.f32 %v247, %v1027
      %v1040 = vsub.f32 %v248, %v1034
      %v1041 = vmul.f32 %v1035, %v1035
      %v1042 = vmul.f32 %v1036, %v1036
      %v1043 = vmul.f32 %v1037, %v1037
      %v1044 = vmul.f32 %v1038, %v1038
      %v1045 = vmul.f32 %v1039, %v1039
      %v1046 = vmul.f32 %v1040, %v1040
      %v1047 = vadd.f32 %v1041, %v1042
      %vm1048 = vcmask 523264
      %v1049 = vsel %vm1048, %v1043, 0.0
      %v1050 = vadd.f32 %v1047, %v1049
      %v1051 = vadd.f32 %v1050, %v1044
      %v1052 = vadd.f32 %v1051, %v1045
      %v1053 = vsel %vm1048, %v1046, 0.0
      %v1054 = vadd.f32 %v1052, %v1053
      %1055 = vadd.xlane.f32.xlu0 %v1054
      %v1056 = vpop.xlane.xlu0 %1055
      %v1057 = vrot.slane %v1056, 4
      %v1058 = vadd.f32 %v1056, %v1057
      %v1059 = vrot.slane %v1058, 2
      %v1060 = vadd.f32 %v1058, %v1059
      %v1061 = vrot.slane %v1060, 1
      %v1062 = vadd.f32 %v1060, %v1061
      %s1063 = vtos %v1062
      %v1064 = vsub.f32 %v259, %v249
      %v1065 = vsub.f32 %v260, %v250
      %v1066 = vsub.f32 %v261, %v251
      %v1067 = vsub.f32 %v262, %v252
      %v1068 = vsub.f32 %v263, %v253
      %v1069 = vsub.f32 %v264, %v254
      %v1070 = vsub.f32 %v265, %v255
      %v1071 = vsub.f32 %v266, %v256
      %v1072 = vsub.f32 %v267, %v257
      %v1073 = vsub.f32 %v268, %v258
      %v1074 = vmul.f32 %v1064, %v1064
      %v1075 = vmul.f32 %v1065, %v1065
      %v1076 = vmul.f32 %v1066, %v1066
      %v1077 = vmul.f32 %v1067, %v1067
      %v1078 = vmul.f32 %v1068, %v1068
      %v1079 = vmul.f32 %v1069, %v1069
      %v1080 = vmul.f32 %v1070, %v1070
      %v1081 = vmul.f32 %v1071, %v1071
      %v1082 = vmul.f32 %v1072, %v1072
      %v1083 = vmul.f32 %v1073, %v1073
      %v1084 = vadd.f32 %v1074, %v1075
      %v1085 = vadd.f32 %v1084, %v1076
      %v1086 = vadd.f32 %v1085, %v1077
      %v1087 = vadd.f32 %v1086, %v1078
      %v1088 = vadd.f32 %v1087, %v1079
      %v1089 = vadd.f32 %v1088, %v1080
      %v1090 = vadd.f32 %v1089, %v1081
      %v1091 = vadd.f32 %v1090, %v1082
      %v1092 = vadd.f32 %v1091, %v1083
      %1093 = vadd.xlane.f32.xlu0 %v1092
      %v1094 = vpop.xlane.xlu0 %1093
      %v1095 = vrot.slane %v1094, 4
      %v1096 = vadd.f32 %v1094, %v1095
      %v1097 = vrot.slane %v1096, 2
      %v1098 = vadd.f32 %v1096, %v1097
      %v1099 = vrot.slane %v1098, 1
      %v1100 = vadd.f32 %v1098, %v1099
      %s1101 = vtos %v1100
      %v1102 = vld [vmem:[%s4] sm:$0xff]
      %v1103 = vld [vmem:[%s4 + $0x8] sm:$0xff]
      %v1104 = vld [vmem:[%s4 + $0x10] sm:$0xff]
      %v1105 = vld [vmem:[%s4 + $0x18] sm:$0xff]
      %v1106 = vld [vmem:[%s4 + $0x20] sm:$0xff]
      %v1107 = vld [vmem:[%s4 + $0x28] sm:$0xff]
      %v1108 = vld [vmem:[%s4 + $0x30] sm:$0xff]
      %v1109 = vld [vmem:[%s4 + $0x38] sm:$0xff]
      %v1110 = vld [vmem:[%s4 + $0x40] sm:$0xff]
      %v1111 = vld [vmem:[%s4 + $0x48] sm:$0xff]
      %v1112 = vld [vmem:[%s4 + $0x50] sm:$0xff]
      %v1113 = vld [vmem:[%s4 + $0x58] sm:$0xff]
      %v1114 = vld [vmem:[%s4 + $0x60] sm:$0xff]
      %v1115 = vld [vmem:[%s4 + $0x68] sm:$0xff]
      %v1116 = vld [vmem:[%s4 + $0x70] sm:$0xff]
      %v1117 = vld [vmem:[%s4 + $0x78] sm:$0xff]
      %v1118 = vld [vmem:[%s4 + $0x80] sm:$0xff]
      %v1119 = vld [vmem:[%s4 + $0x88] sm:$0xff]
      %v1120 = vld [vmem:[%s4 + $0x90] sm:$0xff]
      %v1121 = vld [vmem:[%s4 + $0x98] sm:$0xff]
      %v1122 = vld [vmem:[%s4 + $0xa0] sm:$0xff]
      %v1123 = vld [vmem:[%s4 + $0xa8] sm:$0xff]
      %v1124 = vld [vmem:[%s4 + $0xb0] sm:$0xff]
      %v1125 = vld [vmem:[%s4 + $0xb8] sm:$0xff]
      %v1126 = vld [vmem:[%s4 + $0xc0] sm:$0xff]
      %v1127 = vld [vmem:[%s4 + $0xc8] sm:$0xff]
      %v1128 = vld [vmem:[%s4 + $0xd0] sm:$0xff]
      %v1129 = vld [vmem:[%s4 + $0xd8] sm:$0xff]
      %v1130 = vld [vmem:[%s4 + $0xe0] sm:$0xff]
      %v1131 = vld [vmem:[%s4 + $0xe8] sm:$0xff]
      %v1132 = vld [vmem:[%s4 + $0xf0] sm:$0xff]
      %v1133 = vld [vmem:[%s4 + $0xf8] sm:$0xff]
      %v1134 = vld [vmem:[%s4 + $0x100] sm:$0xff]
      %v1135 = vld [vmem:[%s4 + $0x108] sm:$0xff]
      %v1136 = vld [vmem:[%s4 + $0x110] sm:$0xff]
      %v1137 = vld [vmem:[%s4 + $0x118] sm:$0xff]
      %v1138 = vld [vmem:[%s4 + $0x120] sm:$0xff]
      %v1139 = vld [vmem:[%s4 + $0x128] sm:$0xff]
      %v1140 = vld [vmem:[%s4 + $0x130] sm:$0xff]
      %v1141 = vld [vmem:[%s4 + $0x138] sm:$0xff]
      %v1142 = vld [vmem:[%s4 + $0x140] sm:$0xff]
      %v1143 = vld [vmem:[%s4 + $0x148] sm:$0xff]
      %v1144 = vld [vmem:[%s4 + $0x150] sm:$0xff]
      %v1145 = vld [vmem:[%s4 + $0x158] sm:$0xff]
      %v1146 = vld [vmem:[%s4 + $0x160] sm:$0xff]
      %v1147 = vld [vmem:[%s4 + $0x168] sm:$0xff]
      %v1148 = vld [vmem:[%s4 + $0x170] sm:$0xff]
      %v1149 = vld [vmem:[%s4 + $0x178] sm:$0xff]
      %v1150 = vld [vmem:[%s4 + $0x180] sm:$0xff]
      %v1151 = vld [vmem:[%s4 + $0x188] sm:$0xff]
      %v1152 = vld [vmem:[%s4 + $0x190] sm:$0xff]
      %v1153 = vld [vmem:[%s4 + $0x198] sm:$0xff]
      %v1154 = vld [vmem:[%s4 + $0x1a0] sm:$0xff]
      %v1155 = vld [vmem:[%s4 + $0x1a8] sm:$0xff]
      %v1156 = vld [vmem:[%s4 + $0x1b0] sm:$0xff]
      %v1157 = vld [vmem:[%s4 + $0x1b8] sm:$0xff]
      %v1158 = vld [vmem:[%s4 + $0x1c0] sm:$0xff]
      %v1159 = vld [vmem:[%s4 + $0x1c8] sm:$0xff]
      %v1160 = vld [vmem:[%s4 + $0x1d0] sm:$0xff]
      %v1161 = vld [vmem:[%s4 + $0x1d8] sm:$0xff]
      %v1162 = vld [vmem:[%s4 + $0x1e0] sm:$0xff]
      %v1163 = vld [vmem:[%s4 + $0x1e8] sm:$0xff]
      %v1164 = vld [vmem:[%s4 + $0x1f0] sm:$0xff]
      %v1165 = vld [vmem:[%s4 + $0x1f8] sm:$0xff]
      %v1166 = vld [vmem:[%s4 + $0x200] sm:$0xff]
      %v1167 = vld [vmem:[%s4 + $0x208] sm:$0xff]
      %v1168 = vld [vmem:[%s4 + $0x210] sm:$0xff]
      %v1169 = vld [vmem:[%s4 + $0x218] sm:$0xff]
      %v1170 = vld [vmem:[%s4 + $0x220] sm:$0xff]
      %v1171 = vld [vmem:[%s4 + $0x228] sm:$0xff]
      %v1172 = vld [vmem:[%s4 + $0x230] sm:$0xff]
      %v1173 = vld [vmem:[%s4 + $0x238] sm:$0xff]
      %v1174 = vld [vmem:[%s4 + $0x240] sm:$0xff]
      %v1175 = vld [vmem:[%s4 + $0x248] sm:$0xff]
      %v1176 = vld [vmem:[%s4 + $0x250] sm:$0xff]
      %v1177 = vld [vmem:[%s4 + $0x258] sm:$0xff]
      %v1178 = vld [vmem:[%s4 + $0x260] sm:$0xff]
      %v1179 = vld [vmem:[%s4 + $0x268] sm:$0xff]
      %v1180 = vld [vmem:[%s4 + $0x270] sm:$0xff]
      %v1181 = vld [vmem:[%s4 + $0x278] sm:$0xff]
      %1182 = vmatprep.subr.mxu0 0.0
      %1183 = vmatpush1.msra.mxu0 %v1117
      %1184 = vmatprep.subr.mxu0 0.0
      %1185 = vmatpush1.msra.mxu0 %v1116
      %1186 = vmatprep.subr.mxu0 0.0
      %1187 = vmatpush1.msra.mxu0 %v1115
      %1188 = vmatprep.subr.mxu0 0.0
      %1189 = vmatpush1.msra.mxu0 %v1114
      %1190 = vmatprep.subr.mxu0 0.0
      %1191 = vmatpush1.msra.mxu0 %v1113
      %1192 = vmatprep.subr.mxu0 0.0
      %1193 = vmatpush1.msra.mxu0 %v1112
      %1194 = vmatprep.subr.mxu0 0.0
      %1195 = vmatpush1.msra.mxu0 %v1111
      %1196 = vmatprep.subr.mxu0 0.0
      %1197 = vmatpush1.msra.mxu0 %v1110
      %1198 = vmatprep.subr.mxu0 0.0
      %1199 = vmatpush1.msra.mxu0 %v1109
      %1200 = vmatprep.subr.mxu0 0.0
      %1201 = vmatpush1.msra.mxu0 %v1108
      %1202 = vmatprep.subr.mxu0 0.0
      %1203 = vmatpush1.msra.mxu0 %v1107
      %1204 = vmatprep.subr.mxu0 0.0
      %1205 = vmatpush1.msra.mxu0 %v1106
      %1206 = vmatprep.subr.mxu0 0.0
      %1207 = vmatpush1.msra.mxu0 %v1105
      %1208 = vmatprep.subr.mxu0 0.0
      %1209 = vmatpush1.msra.mxu0 %v1104
      %1210 = vmatprep.subr.mxu0 0.0
      %1211 = vmatpush1.msra.mxu0 %v1103
      %1212 = vmatprep.subr.mxu0 0.0
      %1213 = vmatpush1.msra.mxu0 %v1102
      %1214 = vmatprep.subr.mxu0 0.0
      %1215 = vmatpush2.msra.mxu0 %v1133
      %1216 = vmatprep.subr.mxu0 0.0
      %1217 = vmatpush2.msra.mxu0 %v1132
      %1218 = vmatprep.subr.mxu0 0.0
      %1219 = vmatpush2.msra.mxu0 %v1131
      %1220 = vmatprep.subr.mxu0 0.0
      %1221 = vmatpush2.msra.mxu0 %v1130
      %1222 = vmatprep.subr.mxu0 0.0
      %1223 = vmatpush2.msra.mxu0 %v1129
      %1224 = vmatprep.subr.mxu0 0.0
      %1225 = vmatpush2.msra.mxu0 %v1128
      %1226 = vmatprep.subr.mxu0 0.0
      %1227 = vmatpush2.msra.mxu0 %v1127
      %1228 = vmatprep.subr.mxu0 0.0
      %1229 = vmatpush2.msra.mxu0 %v1126
      %1230 = vmatprep.subr.mxu0 0.0
      %1231 = vmatpush2.msra.mxu0 %v1125
      %1232 = vmatprep.subr.mxu0 0.0
      %1233 = vmatpush2.msra.mxu0 %v1124
      %1234 = vmatprep.subr.mxu0 0.0
      %1235 = vmatpush2.msra.mxu0 %v1123
      %1236 = vmatprep.subr.mxu0 0.0
      %1237 = vmatpush2.msra.mxu0 %v1122
      %1238 = vmatprep.subr.mxu0 0.0
      %1239 = vmatpush2.msra.mxu0 %v1121
      %1240 = vmatprep.subr.mxu0 0.0
      %1241 = vmatpush2.msra.mxu0 %v1120
      %1242 = vmatprep.subr.mxu0 0.0
      %1243 = vmatpush2.msra.mxu0 %v1119
      %1244 = vmatprep.subr.mxu0 0.0
      %1245 = vmatpush2.msra.mxu0 %v1118
      %1246 = vmatprep.mubr.f32.mxu0 %v1065
      %1247 = vmatmul.mubr.f32.gmra.mxu0 %v1064
      %v1248 = vpop.f32.mrf.mxu0
      %v1249 = vadd.f32 0.0, %v1248
      %v1250 = vpop.f32.mrf.mxu0
      %1251 = vmatprep.mubr.f32.mxu0 %v1070
      %1252 = vmatmul.mubr.f32.gmra.mxu0 %v1069
      %v1253 = vpop.f32.mrf.mxu0
      %v1254 = vadd.f32 0.0, %v1253
      %v1255 = vpop.f32.mrf.mxu0
      %1256 = vdwg.mxu0
      %1257 = vmatprep.subr.mxu0 0.0
      %1258 = vmatpush1.msra.mxu0 %v1149
      %1259 = vmatprep.subr.mxu0 0.0
      %1260 = vmatpush1.msra.mxu0 %v1148
      %1261 = vmatprep.subr.mxu0 0.0
      %1262 = vmatpush1.msra.mxu0 %v1147
      %1263 = vmatprep.subr.mxu0 0.0
      %1264 = vmatpush1.msra.mxu0 %v1146
      %1265 = vmatprep.subr.mxu0 0.0
      %1266 = vmatpush1.msra.mxu0 %v1145
      %1267 = vmatprep.subr.mxu0 0.0
      %1268 = vmatpush1.msra.mxu0 %v1144
      %1269 = vmatprep.subr.mxu0 0.0
      %1270 = vmatpush1.msra.mxu0 %v1143
      %1271 = vmatprep.subr.mxu0 0.0
      %1272 = vmatpush1.msra.mxu0 %v1142
      %1273 = vmatprep.subr.mxu0 0.0
      %1274 = vmatpush1.msra.mxu0 %v1141
      %1275 = vmatprep.subr.mxu0 0.0
      %1276 = vmatpush1.msra.mxu0 %v1140
      %1277 = vmatprep.subr.mxu0 0.0
      %1278 = vmatpush1.msra.mxu0 %v1139
      %1279 = vmatprep.subr.mxu0 0.0
      %1280 = vmatpush1.msra.mxu0 %v1138
      %1281 = vmatprep.subr.mxu0 0.0
      %1282 = vmatpush1.msra.mxu0 %v1137
      %1283 = vmatprep.subr.mxu0 0.0
      %1284 = vmatpush1.msra.mxu0 %v1136
      %1285 = vmatprep.subr.mxu0 0.0
      %1286 = vmatpush1.msra.mxu0 %v1135
      %1287 = vmatprep.subr.mxu0 0.0
      %1288 = vmatpush1.msra.mxu0 %v1134
      %1289 = vmatprep.subr.mxu0 0.0
      %1290 = vmatpush2.msra.mxu0 %v1165
      %1291 = vmatprep.subr.mxu0 0.0
      %1292 = vmatpush2.msra.mxu0 %v1164
      %1293 = vmatprep.subr.mxu0 0.0
      %1294 = vmatpush2.msra.mxu0 %v1163
      %1295 = vmatprep.subr.mxu0 0.0
      %1296 = vmatpush2.msra.mxu0 %v1162
      %1297 = vmatprep.subr.mxu0 0.0
      %1298 = vmatpush2.msra.mxu0 %v1161
      %1299 = vmatprep.subr.mxu0 0.0
      %1300 = vmatpush2.msra.mxu0 %v1160
      %1301 = vmatprep.subr.mxu0 0.0
      %1302 = vmatpush2.msra.mxu0 %v1159
      %1303 = vmatprep.subr.mxu0 0.0
      %1304 = vmatpush2.msra.mxu0 %v1158
      %1305 = vmatprep.subr.mxu0 0.0
      %1306 = vmatpush2.msra.mxu0 %v1157
      %1307 = vmatprep.subr.mxu0 0.0
      %1308 = vmatpush2.msra.mxu0 %v1156
      %1309 = vmatprep.subr.mxu0 0.0
      %1310 = vmatpush2.msra.mxu0 %v1155
      %1311 = vmatprep.subr.mxu0 0.0
      %1312 = vmatpush2.msra.mxu0 %v1154
      %1313 = vmatprep.subr.mxu0 0.0
      %1314 = vmatpush2.msra.mxu0 %v1153
      %1315 = vmatprep.subr.mxu0 0.0
      %1316 = vmatpush2.msra.mxu0 %v1152
      %1317 = vmatprep.subr.mxu0 0.0
      %1318 = vmatpush2.msra.mxu0 %v1151
      %1319 = vmatprep.subr.mxu0 0.0
      %1320 = vmatpush2.msra.mxu0 %v1150
      %1321 = vmatprep.mubr.f32.mxu0 %v1067
      %1322 = vmatmul.mubr.f32.gmra.mxu0 %v1066
      %v1323 = vpop.f32.mrf.mxu0
      %v1324 = vadd.f32 %v1249, %v1323
      %v1325 = vpop.f32.mrf.mxu0
      %1326 = vmatprep.mubr.f32.mxu0 %v1072
      %1327 = vmatmul.mubr.f32.gmra.mxu0 %v1071
      %v1328 = vpop.f32.mrf.mxu0
      %v1329 = vadd.f32 %v1254, %v1328
      %v1330 = vpop.f32.mrf.mxu0
      %1331 = vdwg.mxu0
      %1332 = vmatprep.subr.mxu0 0.0
      %1333 = vmatpush1.msra.mxu0 %v1181
      %1334 = vmatprep.subr.mxu0 0.0
      %1335 = vmatpush1.msra.mxu0 %v1180
      %1336 = vmatprep.subr.mxu0 0.0
      %1337 = vmatpush1.msra.mxu0 %v1179
      %1338 = vmatprep.subr.mxu0 0.0
      %1339 = vmatpush1.msra.mxu0 %v1178
      %1340 = vmatprep.subr.mxu0 0.0
      %1341 = vmatpush1.msra.mxu0 %v1177
      %1342 = vmatprep.subr.mxu0 0.0
      %1343 = vmatpush1.msra.mxu0 %v1176
      %1344 = vmatprep.subr.mxu0 0.0
      %1345 = vmatpush1.msra.mxu0 %v1175
      %1346 = vmatprep.subr.mxu0 0.0
      %1347 = vmatpush1.msra.mxu0 %v1174
      %1348 = vmatprep.subr.mxu0 0.0
      %1349 = vmatpush1.msra.mxu0 %v1173
      %1350 = vmatprep.subr.mxu0 0.0
      %1351 = vmatpush1.msra.mxu0 %v1172
      %1352 = vmatprep.subr.mxu0 0.0
      %1353 = vmatpush1.msra.mxu0 %v1171
      %1354 = vmatprep.subr.mxu0 0.0
      %1355 = vmatpush1.msra.mxu0 %v1170
      %1356 = vmatprep.subr.mxu0 0.0
      %1357 = vmatpush1.msra.mxu0 %v1169
      %1358 = vmatprep.subr.mxu0 0.0
      %1359 = vmatpush1.msra.mxu0 %v1168
      %1360 = vmatprep.subr.mxu0 0.0
      %1361 = vmatpush1.msra.mxu0 %v1167
      %1362 = vmatprep.subr.mxu0 0.0
      %1363 = vmatpush1.msra.mxu0 %v1166
      %1364 = vmatprep.subr.mxu0 0.0
      %1365 = vmatpush2.msra.mxu0 0.0
      %1366 = vmatprep.subr.mxu0 0.0
      %1367 = vmatpush2.msra.mxu0 0.0
      %1368 = vmatprep.subr.mxu0 0.0
      %1369 = vmatpush2.msra.mxu0 0.0
      %1370 = vmatprep.subr.mxu0 0.0
      %1371 = vmatpush2.msra.mxu0 0.0
      %1372 = vmatprep.subr.mxu0 0.0
      %1373 = vmatpush2.msra.mxu0 0.0
      %1374 = vmatprep.subr.mxu0 0.0
      %1375 = vmatpush2.msra.mxu0 0.0
      %1376 = vmatprep.subr.mxu0 0.0
      %1377 = vmatpush2.msra.mxu0 0.0
      %1378 = vmatprep.subr.mxu0 0.0
      %1379 = vmatpush2.msra.mxu0 0.0
      %1380 = vmatprep.subr.mxu0 0.0
      %1381 = vmatpush2.msra.mxu0 0.0
      %1382 = vmatprep.subr.mxu0 0.0
      %1383 = vmatpush2.msra.mxu0 0.0
      %1384 = vmatprep.subr.mxu0 0.0
      %1385 = vmatpush2.msra.mxu0 0.0
      %1386 = vmatprep.subr.mxu0 0.0
      %1387 = vmatpush2.msra.mxu0 0.0
      %1388 = vmatprep.subr.mxu0 0.0
      %1389 = vmatpush2.msra.mxu0 0.0
      %1390 = vmatprep.subr.mxu0 0.0
      %1391 = vmatpush2.msra.mxu0 0.0
      %1392 = vmatprep.subr.mxu0 0.0
      %1393 = vmatpush2.msra.mxu0 0.0
      %1394 = vmatprep.subr.mxu0 0.0
      %1395 = vmatpush2.msra.mxu0 0.0
      %1396 = vmatprep.mubr.f32.mxu0 0.0
      %1397 = vmatmul.mubr.f32.gmra.mxu0 %v1068
      %v1398 = vpop.f32.mrf.mxu0
      %v1399 = vadd.f32 %v1324, %v1398
      %v1400 = vpop.f32.mrf.mxu0
      %1401 = vmatprep.mubr.f32.mxu0 0.0
      %1402 = vmatmul.mubr.f32.gmra.mxu0 %v1073
      %v1403 = vpop.f32.mrf.mxu0
      %v1404 = vadd.f32 %v1329, %v1403
      %v1405 = vpop.f32.mrf.mxu0
      %1406 = vdwg.mxu0
      %1407 = vmatprep.subr.mxu0 0.0
      %1408 = vmatpush1.msra.mxu0 %v1117
      %1409 = vmatprep.subr.mxu0 0.0
      %1410 = vmatpush1.msra.mxu0 %v1116
      %1411 = vmatprep.subr.mxu0 0.0
      %1412 = vmatpush1.msra.mxu0 %v1115
      %1413 = vmatprep.subr.mxu0 0.0
      %1414 = vmatpush1.msra.mxu0 %v1114
      %1415 = vmatprep.subr.mxu0 0.0
      %1416 = vmatpush1.msra.mxu0 %v1113
      %1417 = vmatprep.subr.mxu0 0.0
      %1418 = vmatpush1.msra.mxu0 %v1112
      %1419 = vmatprep.subr.mxu0 0.0
      %1420 = vmatpush1.msra.mxu0 %v1111
      %1421 = vmatprep.subr.mxu0 0.0
      %1422 = vmatpush1.msra.mxu0 %v1110
      %1423 = vmatprep.subr.mxu0 0.0
      %1424 = vmatpush1.msra.mxu0 %v1109
      %1425 = vmatprep.subr.mxu0 0.0
      %1426 = vmatpush1.msra.mxu0 %v1108
      %1427 = vmatprep.subr.mxu0 0.0
      %1428 = vmatpush1.msra.mxu0 %v1107
      %1429 = vmatprep.subr.mxu0 0.0
      %1430 = vmatpush1.msra.mxu0 %v1106
      %1431 = vmatprep.subr.mxu0 0.0
      %1432 = vmatpush1.msra.mxu0 %v1105
      %1433 = vmatprep.subr.mxu0 0.0
      %1434 = vmatpush1.msra.mxu0 %v1104
      %1435 = vmatprep.subr.mxu0 0.0
      %1436 = vmatpush1.msra.mxu0 %v1103
      %1437 = vmatprep.subr.mxu0 0.0
      %1438 = vmatpush1.msra.mxu0 %v1102
      %1439 = vmatprep.subr.mxu0 0.0
      %1440 = vmatpush2.msra.mxu0 %v1133
      %1441 = vmatprep.subr.mxu0 0.0
      %1442 = vmatpush2.msra.mxu0 %v1132
      %1443 = vmatprep.subr.mxu0 0.0
      %1444 = vmatpush2.msra.mxu0 %v1131
      %1445 = vmatprep.subr.mxu0 0.0
      %1446 = vmatpush2.msra.mxu0 %v1130
      %1447 = vmatprep.subr.mxu0 0.0
      %1448 = vmatpush2.msra.mxu0 %v1129
      %1449 = vmatprep.subr.mxu0 0.0
      %1450 = vmatpush2.msra.mxu0 %v1128
      %1451 = vmatprep.subr.mxu0 0.0
      %1452 = vmatpush2.msra.mxu0 %v1127
      %1453 = vmatprep.subr.mxu0 0.0
      %1454 = vmatpush2.msra.mxu0 %v1126
      %1455 = vmatprep.subr.mxu0 0.0
      %1456 = vmatpush2.msra.mxu0 %v1125
      %1457 = vmatprep.subr.mxu0 0.0
      %1458 = vmatpush2.msra.mxu0 %v1124
      %1459 = vmatprep.subr.mxu0 0.0
      %1460 = vmatpush2.msra.mxu0 %v1123
      %1461 = vmatprep.subr.mxu0 0.0
      %1462 = vmatpush2.msra.mxu0 %v1122
      %1463 = vmatprep.subr.mxu0 0.0
      %1464 = vmatpush2.msra.mxu0 %v1121
      %1465 = vmatprep.subr.mxu0 0.0
      %1466 = vmatpush2.msra.mxu0 %v1120
      %1467 = vmatprep.subr.mxu0 0.0
      %1468 = vmatpush2.msra.mxu0 %v1119
      %1469 = vmatprep.subr.mxu0 0.0
      %1470 = vmatpush2.msra.mxu0 %v1118
      %1471 = vmatprep.mubr.f32.mxu0 %v250
      %1472 = vmatmul.mubr.f32.gmra.mxu0 %v249
      %v1473 = vpop.f32.mrf.mxu0
      %v1474 = vadd.f32 0.0, %v1473
      %v1475 = vpop.f32.mrf.mxu0
      %1476 = vmatprep.mubr.f32.mxu0 %v255
      %1477 = vmatmul.mubr.f32.gmra.mxu0 %v254
      %v1478 = vpop.f32.mrf.mxu0
      %v1479 = vadd.f32 0.0, %v1478
      %v1480 = vpop.f32.mrf.mxu0
      %1481 = vdwg.mxu0
      %1482 = vmatprep.subr.mxu0 0.0
      %1483 = vmatpush1.msra.mxu0 %v1149
      %1484 = vmatprep.subr.mxu0 0.0
      %1485 = vmatpush1.msra.mxu0 %v1148
      %1486 = vmatprep.subr.mxu0 0.0
      %1487 = vmatpush1.msra.mxu0 %v1147
      %1488 = vmatprep.subr.mxu0 0.0
      %1489 = vmatpush1.msra.mxu0 %v1146
      %1490 = vmatprep.subr.mxu0 0.0
      %1491 = vmatpush1.msra.mxu0 %v1145
      %1492 = vmatprep.subr.mxu0 0.0
      %1493 = vmatpush1.msra.mxu0 %v1144
      %1494 = vmatprep.subr.mxu0 0.0
      %1495 = vmatpush1.msra.mxu0 %v1143
      %1496 = vmatprep.subr.mxu0 0.0
      %1497 = vmatpush1.msra.mxu0 %v1142
      %1498 = vmatprep.subr.mxu0 0.0
      %1499 = vmatpush1.msra.mxu0 %v1141
      %1500 = vmatprep.subr.mxu0 0.0
      %1501 = vmatpush1.msra.mxu0 %v1140
      %1502 = vmatprep.subr.mxu0 0.0
      %1503 = vmatpush1.msra.mxu0 %v1139
      %1504 = vmatprep.subr.mxu0 0.0
      %1505 = vmatpush1.msra.mxu0 %v1138
      %1506 = vmatprep.subr.mxu0 0.0
      %1507 = vmatpush1.msra.mxu0 %v1137
      %1508 = vmatprep.subr.mxu0 0.0
      %1509 = vmatpush1.msra.mxu0 %v1136
      %1510 = vmatprep.subr.mxu0 0.0
      %1511 = vmatpush1.msra.mxu0 %v1135
      %1512 = vmatprep.subr.mxu0 0.0
      %1513 = vmatpush1.msra.mxu0 %v1134
      %1514 = vmatprep.subr.mxu0 0.0
      %1515 = vmatpush2.msra.mxu0 %v1165
      %1516 = vmatprep.subr.mxu0 0.0
      %1517 = vmatpush2.msra.mxu0 %v1164
      %1518 = vmatprep.subr.mxu0 0.0
      %1519 = vmatpush2.msra.mxu0 %v1163
      %1520 = vmatprep.subr.mxu0 0.0
      %1521 = vmatpush2.msra.mxu0 %v1162
      %1522 = vmatprep.subr.mxu0 0.0
      %1523 = vmatpush2.msra.mxu0 %v1161
      %1524 = vmatprep.subr.mxu0 0.0
      %1525 = vmatpush2.msra.mxu0 %v1160
      %1526 = vmatprep.subr.mxu0 0.0
      %1527 = vmatpush2.msra.mxu0 %v1159
      %1528 = vmatprep.subr.mxu0 0.0
      %1529 = vmatpush2.msra.mxu0 %v1158
      %1530 = vmatprep.subr.mxu0 0.0
      %1531 = vmatpush2.msra.mxu0 %v1157
      %1532 = vmatprep.subr.mxu0 0.0
      %1533 = vmatpush2.msra.mxu0 %v1156
      %1534 = vmatprep.subr.mxu0 0.0
      %1535 = vmatpush2.msra.mxu0 %v1155
      %1536 = vmatprep.subr.mxu0 0.0
      %1537 = vmatpush2.msra.mxu0 %v1154
      %1538 = vmatprep.subr.mxu0 0.0
      %1539 = vmatpush2.msra.mxu0 %v1153
      %1540 = vmatprep.subr.mxu0 0.0
      %1541 = vmatpush2.msra.mxu0 %v1152
      %1542 = vmatprep.subr.mxu0 0.0
      %1543 = vmatpush2.msra.mxu0 %v1151
      %1544 = vmatprep.subr.mxu0 0.0
      %1545 = vmatpush2.msra.mxu0 %v1150
      %1546 = vmatprep.mubr.f32.mxu0 %v252
      %1547 = vmatmul.mubr.f32.gmra.mxu0 %v251
      %v1548 = vpop.f32.mrf.mxu0
      %v1549 = vadd.f32 %v1474, %v1548
      %v1550 = vpop.f32.mrf.mxu0
      %1551 = vmatprep.mubr.f32.mxu0 %v257
      %1552 = vmatmul.mubr.f32.gmra.mxu0 %v256
      %v1553 = vpop.f32.mrf.mxu0
      %v1554 = vadd.f32 %v1479, %v1553
      %v1555 = vpop.f32.mrf.mxu0
      %1556 = vdwg.mxu0
      %1557 = vmatprep.subr.mxu0 0.0
      %1558 = vmatpush1.msra.mxu0 %v1181
      %1559 = vmatprep.subr.mxu0 0.0
      %1560 = vmatpush1.msra.mxu0 %v1180
      %1561 = vmatprep.subr.mxu0 0.0
      %1562 = vmatpush1.msra.mxu0 %v1179
      %1563 = vmatprep.subr.mxu0 0.0
      %1564 = vmatpush1.msra.mxu0 %v1178
      %1565 = vmatprep.subr.mxu0 0.0
      %1566 = vmatpush1.msra.mxu0 %v1177
      %1567 = vmatprep.subr.mxu0 0.0
      %1568 = vmatpush1.msra.mxu0 %v1176
      %1569 = vmatprep.subr.mxu0 0.0
      %1570 = vmatpush1.msra.mxu0 %v1175
      %1571 = vmatprep.subr.mxu0 0.0
      %1572 = vmatpush1.msra.mxu0 %v1174
      %1573 = vmatprep.subr.mxu0 0.0
      %1574 = vmatpush1.msra.mxu0 %v1173
      %1575 = vmatprep.subr.mxu0 0.0
      %1576 = vmatpush1.msra.mxu0 %v1172
      %1577 = vmatprep.subr.mxu0 0.0
      %1578 = vmatpush1.msra.mxu0 %v1171
      %1579 = vmatprep.subr.mxu0 0.0
      %1580 = vmatpush1.msra.mxu0 %v1170
      %1581 = vmatprep.subr.mxu0 0.0
      %1582 = vmatpush1.msra.mxu0 %v1169
      %1583 = vmatprep.subr.mxu0 0.0
      %1584 = vmatpush1.msra.mxu0 %v1168
      %1585 = vmatprep.subr.mxu0 0.0
      %1586 = vmatpush1.msra.mxu0 %v1167
      %1587 = vmatprep.subr.mxu0 0.0
      %1588 = vmatpush1.msra.mxu0 %v1166
      %1589 = vmatprep.subr.mxu0 0.0
      %1590 = vmatpush2.msra.mxu0 0.0
      %1591 = vmatprep.subr.mxu0 0.0
      %1592 = vmatpush2.msra.mxu0 0.0
      %1593 = vmatprep.subr.mxu0 0.0
      %1594 = vmatpush2.msra.mxu0 0.0
      %1595 = vmatprep.subr.mxu0 0.0
      %1596 = vmatpush2.msra.mxu0 0.0
      %1597 = vmatprep.subr.mxu0 0.0
      %1598 = vmatpush2.msra.mxu0 0.0
      %1599 = vmatprep.subr.mxu0 0.0
      %1600 = vmatpush2.msra.mxu0 0.0
      %1601 = vmatprep.subr.mxu0 0.0
      %1602 = vmatpush2.msra.mxu0 0.0
      %1603 = vmatprep.subr.mxu0 0.0
      %1604 = vmatpush2.msra.mxu0 0.0
      %1605 = vmatprep.subr.mxu0 0.0
      %1606 = vmatpush2.msra.mxu0 0.0
      %1607 = vmatprep.subr.mxu0 0.0
      %1608 = vmatpush2.msra.mxu0 0.0
      %1609 = vmatprep.subr.mxu0 0.0
      %1610 = vmatpush2.msra.mxu0 0.0
      %1611 = vmatprep.subr.mxu0 0.0
      %1612 = vmatpush2.msra.mxu0 0.0
      %1613 = vmatprep.subr.mxu0 0.0
      %1614 = vmatpush2.msra.mxu0 0.0
      %1615 = vmatprep.subr.mxu0 0.0
      %1616 = vmatpush2.msra.mxu0 0.0
      %1617 = vmatprep.subr.mxu0 0.0
      %1618 = vmatpush2.msra.mxu0 0.0
      %1619 = vmatprep.subr.mxu0 0.0
      %1620 = vmatpush2.msra.mxu0 0.0
      %1621 = vmatprep.mubr.f32.mxu0 0.0
      %1622 = vmatmul.mubr.f32.gmra.mxu0 %v253
      %v1623 = vpop.f32.mrf.mxu0
      %v1624 = vadd.f32 %v1549, %v1623
      %v1625 = vpop.f32.mrf.mxu0
      %1626 = vmatprep.mubr.f32.mxu0 0.0
      %1627 = vmatmul.mubr.f32.gmra.mxu0 %v258
      %v1628 = vpop.f32.mrf.mxu0
      %v1629 = vadd.f32 %v1554, %v1628
      %v1630 = vpop.f32.mrf.mxu0
      %1631 = vdwg.mxu0
      %v1632 = vmul.f32 %v1399, %v1399
      %v1633 = vmul.f32 %v1404, %v1404
      %vm1634 = vcmask 195584
      %v1635 = vsel %vm1634, %v1632, 0.0
      %v1636 = vsel %vm1634, %v1633, 0.0
      %v1637 = vadd.f32 %v1635, %v1636
      %1638 = vadd.xlane.f32.xlu0 %v1637
      %v1639 = vpop.xlane.xlu0 %1638
      %v1640 = vrot.slane %v1639, 4
      %v1641 = vadd.f32 %v1639, %v1640
      %v1642 = vrot.slane %v1641, 2
      %v1643 = vadd.f32 %v1641, %v1642
      %v1644 = vrot.slane %v1643, 1
      %v1645 = vadd.f32 %v1643, %v1644
      %s1646 = vtos %v1645
      %v1647 = vmul.f32 %v1624, %v1624
      %v1648 = vmul.f32 %v1629, %v1629
      %v1649 = vsel %vm1634, %v1647, 0.0
      %v1650 = vsel %vm1634, %v1648, 0.0
      %v1651 = vadd.f32 %v1649, %v1650
      %1652 = vadd.xlane.f32.xlu0 %v1651
      %v1653 = vpop.xlane.xlu0 %1652
      %v1654 = vrot.slane %v1653, 4
      %v1655 = vadd.f32 %v1653, %v1654
      %v1656 = vrot.slane %v1655, 2
      %v1657 = vadd.f32 %v1655, %v1656
      %v1658 = vrot.slane %v1657, 1
      %v1659 = vadd.f32 %v1657, %v1658
      %s1660 = vtos %v1659
      %v1661 = vlaneseq
      %v1662 = vshrl.u32 %v1661, 7
      %vm1663 = vcmp.eq.s32.totalorder %v1662, 0
      %v1664 = vstv %s1063
      %v1665 = vsel %vm1663, %v1664, 0.0
      %vm1666 = vcmp.eq.s32.totalorder %v1662, 1
      %v1667 = vstv %s296
      %v1668 = vsel %vm1666, %v1667, 0.0
      %v1669 = vadd.f32 %v1665, %v1668
      %vm1670 = vcmp.eq.s32.totalorder %v1662, 2
      %v1671 = vstv %s1101
      %v1672 = vsel %vm1670, %v1671, 0.0
      %v1673 = vadd.f32 %v1669, %v1672
      %vm1674 = vcmp.eq.s32.totalorder %v1662, 3
      %v1675 = vstv %s1646
      %v1676 = vsel %vm1674, %v1675, 0.0
      %v1677 = vadd.f32 %v1673, %v1676
      %vm1678 = vcmp.eq.s32.totalorder %v1662, 4
      %v1679 = vstv %s1660
      %v1680 = vsel %vm1678, %v1679, 0.0
      %v1681 = vadd.f32 %v1677, %v1680
      %1682 = vst [vmem:[%s242] sm:$0xff] %v1681
      %p1683 = scmp.lt.s32.totalorder %s16, 1
      %s1684 = scalar_select %p1683, %s16, 1
      %s1685 = smul.addr %s1684, 8
      %s1686 = scalar_lea.vmem %s5, %s1685
      // Predicated region
      $region41: #{fastmri_loss.1} parent=39 // pred_check
        %p1687 = pneg %p149
      $region42: #{fastmri_loss.1} parent=39 // pred_check_branch
        %1689 = sbr.rel (%p1687) target = $region44
      $region43: #{fastmri_loss.1} parent=39 // pred_region
        _
      $region44: #{fastmri_loss.1} parent=39 // pred_fallthru
        _
    $region40: #{fastmri_loss.1} parent=5 // pred_fallthru
      _
    %p1690 = scmp.le.s32.totalorder 2, %s11
    // Predicated region
    $region45: #{fastmri_loss.1} parent=5 // pred_check
      %p1691 = pneg %p1690
    $region46: #{fastmri_loss.1} parent=5 // pred_check_branch
      %1693 = sbr.rel (%p1691) target = $region48
    $region47: #{fastmri_loss.1} parent=5 // pred_region
      %s1694 = ssub.s32 %s11, 2
      // Predicated region
      $region49: #{fastmri_loss.1} parent=47 // pred_check
        %p1695 = pneg %p155
      $region50: #{fastmri_loss.1} parent=47 // pred_check_branch
        %1697 = sbr.rel (%p1695) target = $region52
      $region51: #{fastmri_loss.1} parent=47 // pred_region
        %p1698 = scmp.lt.s32.totalorder %s17, 1
        %s1699 = scalar_select %p1698, %s17, 1
        %s1700 = smul.addr %s1699, 8
        %s1701 = scalar_lea.vmem %s5, %s1700
      $region52: #{fastmri_loss.1} parent=47 // pred_fallthru
        _
    $region48: #{fastmri_loss.1} parent=5 // pred_fallthru
      _
  $region6: #{fastmri_loss.1} parent=0 // loop_footer
    %s15 = sadd.s32 1, %s11
  $region7: #{fastmri_loss.1} parent=0 // loop_footer_branch
    %10 = sbr.rel target = $region3
  $region8: #{fastmri_loss.1} parent=0 // loop_exit
    _

</llo_original>
